<compile_context>
chip_gen: v5e
topology: v5e:2x2
jax: 0.10.0
libtpu: 0.0.40
codegen_flags: <defaults>
</compile_context>

<pallas_src>
import jax
import jax.numpy as jnp
from jax import lax
from jax.experimental import pallas as pl
from jax.experimental.pallas import tpu as pltpu

REDU = 16          # reduction channels (fixed by the module's __init__)
NEG_SLOPE = 0.2


def _leaky(x):
    return jnp.where(x > 0, x, NEG_SLOPE * x)


def _make_kernel(H, W):
    HW = H * W

    def kernel(x_ref, wr_ref, br_ref, wd_ref, bd_ref, mask_ref,
               wo_ref, bo_ref, o_ref):
        # x_ref:    (1, Cin, HW)   channel-major, lanes = H*W (lane-dense)
        # wr_ref:   (16, Cin)      1x1 reduction weights, BN scale folded
        # br_ref:   (16, 1)        BN shift
        # wd_ref:   (16, 27)       depthwise taps (col = d*9+ky*3+kx), BN folded
        # bd_ref:   (16, 3)        per-dilation BN shift
        # mask_ref: (27, HW)       zero-padding validity mask per tap
        # wo_ref:   (Cout, 16)     1x1 output weights, BN scale folded
        # bo_ref:   (Cout, 1)      BN shift
        x = x_ref[0]                                                # (Cin, HW)

        # ---- 1x1 reduction conv as a single MXU matmul + shift + leaky.
        x_redu = _leaky(
            jnp.dot(wr_ref[...], x, preferred_element_type=jnp.float32)
            + br_ref[...])                                          # (16, HW)

        # ---- 3 dilated depthwise 3x3 convs via lane rolls + border masks.
        # (F.interpolate to the same spatial size is the identity -> omitted.)
        fused = x_redu
        for d in range(3):
            dil = d + 1
            acc = None
            for ky in range(3):
                for kx in range(3):
                    tap = d * 9 + ky * 3 + kx
                    s = (ky - 1) * dil * W + (kx - 1) * dil
                    if s == 0:
                        term = x_redu * wd_ref[:, tap:tap + 1]
                    else:
                        rolled = pltpu.roll(x_redu, (-s) % HW, axis=1)
                        term = (rolled * mask_ref[tap:tap + 1, :]
                                * wd_ref[:, tap:tap + 1])
                    acc = term if acc is None else acc + term
            fused = fused + _leaky(acc + bd_ref[:, d:d + 1])

        # ---- 1x1 output conv as one MXU matmul; one contiguous lane-dense store.
        out = jnp.dot(wo_ref[...], fused, preferred_element_type=jnp.float32)
        o_ref[0] = _leaky(out + bo_ref[...])

    return kernel


def _full_spec(arr):
    nd = arr.ndim
    return pl.BlockSpec(arr.shape, lambda n, _nd=nd: (0,) * _nd)


def atrous_block(x_nchw, kparams):
    """x_nchw: (N, Cin, H, W) -> (N, Cout, H, W)."""
    (wr, br, wd, bd, masks, wo, bo) = kparams
    N, Cin, H, W = x_nchw.shape
    Cout = wo.shape[0]
    HW = H * W
    x = x_nchw.reshape(N, Cin, HW).astype(jnp.float32)   # NCHW is already channel-major

    out = pl.pallas_call(
        _make_kernel(H, W),
        out_shape=jax.ShapeDtypeStruct((N, Cout, HW), jnp.float32),
        grid=(N,),
        in_specs=[
            pl.BlockSpec((1, Cin, HW), lambda n: (n, 0, 0)),
            _full_spec(wr), _full_spec(br), _full_spec(wd), _full_spec(bd),
            _full_spec(masks), _full_spec(wo), _full_spec(bo),
        ],
        out_specs=pl.BlockSpec((1, Cout, HW), lambda n: (n, 0, 0)),
        compiler_params=pltpu.CompilerParams(
            dimension_semantics=("parallel",)),     # batches independent -> megacore
    )(x, wr, br, wd, bd, masks, wo, bo)

    return out.reshape(N, Cout, H, W)


def init_raw_params(key, in_channels, out_channels):
    """Deterministic synthetic parameters (kaiming-like conv init, eval-mode BN)."""
    ks = jax.random.split(key, 8)
    eps = 1e-5

    w_redu = jax.random.normal(ks[0], (in_channels, REDU), jnp.float32) \
        * (2.0 / REDU) ** 0.5
    w_depth = jax.random.normal(ks[1], (3, 3, 3, REDU), jnp.float32) \
        * (2.0 / (REDU * 9)) ** 0.5                    # [dilation, ky, kx, C]
    w_out = jax.random.normal(ks[2], (REDU, out_channels), jnp.float32) \
        * (2.0 / out_channels) ** 0.5

    def bn_fold(k, c):
        kg, kb, km, kv = jax.random.split(k, 4)
        gamma = 1.0 + 0.1 * jax.random.normal(kg, (c,), jnp.float32)
        beta = 0.1 * jax.random.normal(kb, (c,), jnp.float32)
        mean = 0.05 * jax.random.normal(km, (c,), jnp.float32)
        var = 1.0 + 0.1 * jax.random.uniform(kv, (c,), jnp.float32)
        scale = gamma / jnp.sqrt(var + eps)
        shift = beta - mean * scale
        return scale, shift

    s_redu, b_redu = bn_fold(ks[3], REDU)
    sd, bd = zip(*[bn_fold(ks[4 + i], REDU) for i in range(3)])
    s_depth = jnp.stack(sd)          # (3, 16)
    b_depth = jnp.stack(bd)          # (3, 16)
    s_out, b_out = bn_fold(ks[7], out_channels)

    return (w_redu, w_depth, w_out,
            s_redu, b_redu, s_depth, b_depth, s_out, b_out)


def prepare_kernel_params(raw, H, W):
    """Fold BN scales into conv weights; build per-tap zero-padding masks."""
    (w_redu, w_depth_4d, w_out,
     s_redu, b_redu, s_depth, b_depth, s_out, b_out) = raw

    wr = w_redu.T * s_redu[:, None]                              # (16, Cin)
    wo = w_out.T * s_out[:, None]                                # (Cout, 16)
    wd = (w_depth_4d * s_depth[:, None, None, :]).reshape(27, REDU).T  # (16, 27)
    br = b_redu.reshape(REDU, 1)
    bd = b_depth.T                                               # (16, 3)
    bo = b_out.reshape(-1, 1)

    hw = jnp.arange(H * W)
    h_idx = hw // W
    w_idx = hw % W
    mask_rows = []
    for d in range(3):
        dil = d + 1
        for ky in range(3):
            for kx in range(3):
                dy = (ky - 1) * dil
                dx = (kx - 1) * dil
                ok = ((h_idx + dy >= 0) & (h_idx + dy < H)
                      & (w_idx + dx >= 0) & (w_idx + dx < W))
                mask_rows.append(ok.astype(jnp.float32))
    masks = jnp.stack(mask_rows)                                 # (27, H*W)

    return (wr, br, wd, bd, masks, wo, bo)


def ref_forward(x_nchw, raw):
    """Pure-JAX reference mirroring the torch forward (eval-mode BN)."""
    (w_redu, w_depth_4d, w_out,
     s_redu, b_redu, s_depth, b_depth, s_out, b_out) = raw
    dn = ('NCHW', 'OIHW', 'NCHW')

    w_redu_oihw = w_redu.T[:, :, None, None]
    y = lax.conv_general_dilated(x_nchw, w_redu_oihw, (1, 1), 'VALID',
                                 dimension_numbers=dn)
    y = y * s_redu.reshape(1, -1, 1, 1) + b_redu.reshape(1, -1, 1, 1)
    x_redu = _leaky(y)

    fused = x_redu
    for d in range(3):
        dil = d + 1
        wdk = jnp.transpose(w_depth_4d[d], (2, 0, 1))[:, None, :, :]
        z = lax.conv_general_dilated(x_redu, wdk, (1, 1), 'SAME',
                                     rhs_dilation=(dil, dil),
                                     dimension_numbers=dn,
                                     feature_group_count=REDU)
        z = z * s_depth[d].reshape(1, -1, 1, 1) + b_depth[d].reshape(1, -1, 1, 1)
        fused = fused + _leaky(z)

    w_out_oihw = w_out.T[:, :, None, None]
    o = lax.conv_general_dilated(fused, w_out_oihw, (1, 1), 'VALID',
                                 dimension_numbers=dn)
    o = o * s_out.reshape(1, -1, 1, 1) + b_out.reshape(1, -1, 1, 1)
    return _leaky(o)


if __name__ == "__main__":
    key = jax.random.PRNGKey(0)
    k_x, k_p = jax.random.split(key)

    N, Cin, H, W = 2, 4, 16, 16
    Cout = 32

    x = jax.random.normal(k_x, (N, Cin, H, W), jnp.float32)
    raw = init_raw_params(k_p, Cin, Cout)
    kparams = prepare_kernel_params(raw, H, W)

    out = atrous_block(x, kparams)
    out = jax.block_until_ready(out)
    assert out.shape == (N, Cout, H, W), out.shape

    ref = ref_forward(x, raw)
    max_err = float(jnp.max(jnp.abs(out - ref)))
    if not bool(jnp.allclose(out, ref, atol=1e-3, rtol=1e-3)):
        raise AssertionError(f"kernel/ref mismatch, max abs err = {max_err}")

    print("KERNEL_OK")
</pallas_src>

<mosaic_0001>
module attributes {stable_mosaic.version = 11 : i64} {
  func.func @kernel(%arg0: i32, %arg1: memref<1x4x256xf32, #tpu.memory_space<vmem>>, %arg2: memref<16x4xf32, #tpu.memory_space<vmem>>, %arg3: memref<16x1xf32, #tpu.memory_space<vmem>>, %arg4: memref<16x27xf32, #tpu.memory_space<vmem>>, %arg5: memref<16x3xf32, #tpu.memory_space<vmem>>, %arg6: memref<27x256xf32, #tpu.memory_space<vmem>>, %arg7: memref<32x16xf32, #tpu.memory_space<vmem>>, %arg8: memref<32x1xf32, #tpu.memory_space<vmem>>, %arg9: memref<1x32x256xf32, #tpu.memory_space<vmem>>) attributes {dimension_semantics = [#tpu.dimension_semantics<parallel>], iteration_bounds = array<i64: 2>, scalar_prefetch = 0 : i64, scratch_operands = 0 : i64, tpu.core_type = #tpu.core_type<tc>, window_params = [{transform_indices = @transform_0, window_bounds = array<i64: 1, 4, 256>}, {pipeline_mode = #tpu.pipeline_mode<synchronous>, transform_indices = @transform_1, window_bounds = array<i64: 16, 4>}, {pipeline_mode = #tpu.pipeline_mode<synchronous>, transform_indices = @transform_2, window_bounds = array<i64: 16, 1>}, {pipeline_mode = #tpu.pipeline_mode<synchronous>, transform_indices = @transform_3, window_bounds = array<i64: 16, 27>}, {pipeline_mode = #tpu.pipeline_mode<synchronous>, transform_indices = @transform_4, window_bounds = array<i64: 16, 3>}, {pipeline_mode = #tpu.pipeline_mode<synchronous>, transform_indices = @transform_5, window_bounds = array<i64: 27, 256>}, {pipeline_mode = #tpu.pipeline_mode<synchronous>, transform_indices = @transform_6, window_bounds = array<i64: 32, 16>}, {pipeline_mode = #tpu.pipeline_mode<synchronous>, transform_indices = @transform_7, window_bounds = array<i64: 32, 1>}, {transform_indices = @transform_8, window_bounds = array<i64: 1, 32, 256>}]} {
    %c0 = arith.constant 0 : index
    %c0_0 = arith.constant 0 : index
    %c0_1 = arith.constant 0 : index
    %0 = vector.load %arg1[%c0, %c0_0, %c0_1] : memref<1x4x256xf32, #tpu.memory_space<vmem>>, vector<1x4x256xf32>
    %1 = vector.shape_cast %0 : vector<1x4x256xf32> to vector<4x256xf32>
    %c0_2 = arith.constant 0 : index
    %c0_3 = arith.constant 0 : index
    %2 = vector.load %arg2[%c0_2, %c0_3] : memref<16x4xf32, #tpu.memory_space<vmem>>, vector<16x4xf32>
    %cst = arith.constant dense<0.000000e+00> : vector<16x256xf32>
    %3 = tpu.matmul %2, %1, %cst {dimension_numbers = #tpu.dot_dimension_numbers<[1], [0], [0], [1], [0, 0, 1, 1], [], []>} : vector<16x4xf32>, vector<4x256xf32>, vector<16x256xf32> -> vector<16x256xf32>
    %c0_4 = arith.constant 0 : index
    %c0_5 = arith.constant 0 : index
    %4 = vector.load %arg3[%c0_4, %c0_5] : memref<16x1xf32, #tpu.memory_space<vmem>>, vector<16x1xf32>
    %5 = vector.broadcast %4 : vector<16x1xf32> to vector<16x256xf32>
    %6 = arith.addf %3, %5 : vector<16x256xf32>
    %cst_6 = arith.constant 0.000000e+00 : f32
    %7 = vector.broadcast %cst_6 : f32 to vector<16x256xf32>
    %8 = arith.cmpf ogt, %6, %7 : vector<16x256xf32>
    %cst_7 = arith.constant 2.000000e-01 : f32
    %9 = vector.broadcast %cst_7 : f32 to vector<16x256xf32>
    %10 = arith.mulf %9, %6 : vector<16x256xf32>
    %11 = arith.select %8, %6, %10 : vector<16x256xi1>, vector<16x256xf32>
    %c17_i32 = arith.constant 17 : i32
    %12 = tpu.dynamic_rotate %11 by %c17_i32 dim 1 : vector<16x256xf32>, i32 -> vector<16x256xf32>
    %c0_8 = arith.constant 0 : index
    %c0_9 = arith.constant 0 : index
    %13 = vector.load %arg6[%c0_8, %c0_9] : memref<27x256xf32, #tpu.memory_space<vmem>>, vector<1x256xf32>
    %14 = vector.broadcast %13 : vector<1x256xf32> to vector<16x256xf32>
    %15 = arith.mulf %12, %14 : vector<16x256xf32>
    %c0_10 = arith.constant 0 : index
    %c0_11 = arith.constant 0 : index
    %16 = vector.load %arg4[%c0_10, %c0_11] : memref<16x27xf32, #tpu.memory_space<vmem>>, vector<16x1xf32>
    %17 = vector.broadcast %16 : vector<16x1xf32> to vector<16x256xf32>
    %18 = arith.mulf %15, %17 : vector<16x256xf32>
    %c16_i32 = arith.constant 16 : i32
    %19 = tpu.dynamic_rotate %11 by %c16_i32 dim 1 : vector<16x256xf32>, i32 -> vector<16x256xf32>
    %c1 = arith.constant 1 : index
    %c0_12 = arith.constant 0 : index
    %20 = vector.load %arg6[%c1, %c0_12] : memref<27x256xf32, #tpu.memory_space<vmem>>, vector<1x256xf32>
    %21 = vector.broadcast %20 : vector<1x256xf32> to vector<16x256xf32>
    %22 = arith.mulf %19, %21 : vector<16x256xf32>
    %c0_13 = arith.constant 0 : index
    %c1_14 = arith.constant 1 : index
    %23 = vector.load %arg4[%c0_13, %c1_14] : memref<16x27xf32, #tpu.memory_space<vmem>>, vector<16x1xf32>
    %24 = vector.broadcast %23 : vector<16x1xf32> to vector<16x256xf32>
    %25 = arith.mulf %22, %24 : vector<16x256xf32>
    %26 = arith.addf %18, %25 : vector<16x256xf32>
    %c15_i32 = arith.constant 15 : i32
    %27 = tpu.dynamic_rotate %11 by %c15_i32 dim 1 : vector<16x256xf32>, i32 -> vector<16x256xf32>
    %c2 = arith.constant 2 : index
    %c0_15 = arith.constant 0 : index
    %28 = vector.load %arg6[%c2, %c0_15] : memref<27x256xf32, #tpu.memory_space<vmem>>, vector<1x256xf32>
    %29 = vector.broadcast %28 : vector<1x256xf32> to vector<16x256xf32>
    %30 = arith.mulf %27, %29 : vector<16x256xf32>
    %c0_16 = arith.constant 0 : index
    %c2_17 = arith.constant 2 : index
    %31 = vector.load %arg4[%c0_16, %c2_17] : memref<16x27xf32, #tpu.memory_space<vmem>>, vector<16x1xf32>
    %32 = vector.broadcast %31 : vector<16x1xf32> to vector<16x256xf32>
    %33 = arith.mulf %30, %32 : vector<16x256xf32>
    %34 = arith.addf %26, %33 : vector<16x256xf32>
    %c1_i32 = arith.constant 1 : i32
    %35 = tpu.dynamic_rotate %11 by %c1_i32 dim 1 : vector<16x256xf32>, i32 -> vector<16x256xf32>
    %c3 = arith.constant 3 : index
    %c0_18 = arith.constant 0 : index
    %36 = vector.load %arg6[%c3, %c0_18] : memref<27x256xf32, #tpu.memory_space<vmem>>, vector<1x256xf32>
    %37 = vector.broadcast %36 : vector<1x256xf32> to vector<16x256xf32>
    %38 = arith.mulf %35, %37 : vector<16x256xf32>
    %c0_19 = arith.constant 0 : index
    %c3_20 = arith.constant 3 : index
    %39 = vector.load %arg4[%c0_19, %c3_20] : memref<16x27xf32, #tpu.memory_space<vmem>>, vector<16x1xf32>
    %40 = vector.broadcast %39 : vector<16x1xf32> to vector<16x256xf32>
    %41 = arith.mulf %38, %40 : vector<16x256xf32>
    %42 = arith.addf %34, %41 : vector<16x256xf32>
    %c0_21 = arith.constant 0 : index
    %c4 = arith.constant 4 : index
    %43 = vector.load %arg4[%c0_21, %c4] : memref<16x27xf32, #tpu.memory_space<vmem>>, vector<16x1xf32>
    %44 = vector.broadcast %43 : vector<16x1xf32> to vector<16x256xf32>
    %45 = arith.mulf %11, %44 : vector<16x256xf32>
    %46 = arith.addf %42, %45 : vector<16x256xf32>
    %c255_i32 = arith.constant 255 : i32
    %47 = tpu.dynamic_rotate %11 by %c255_i32 dim 1 : vector<16x256xf32>, i32 -> vector<16x256xf32>
    %c5 = arith.constant 5 : index
    %c0_22 = arith.constant 0 : index
    %48 = vector.load %arg6[%c5, %c0_22] : memref<27x256xf32, #tpu.memory_space<vmem>>, vector<1x256xf32>
    %49 = vector.broadcast %48 : vector<1x256xf32> to vector<16x256xf32>
    %50 = arith.mulf %47, %49 : vector<16x256xf32>
    %c0_23 = arith.constant 0 : index
    %c5_24 = arith.constant 5 : index
    %51 = vector.load %arg4[%c0_23, %c5_24] : memref<16x27xf32, #tpu.memory_space<vmem>>, vector<16x1xf32>
    %52 = vector.broadcast %51 : vector<16x1xf32> to vector<16x256xf32>
    %53 = arith.mulf %50, %52 : vector<16x256xf32>
    %54 = arith.addf %46, %53 : vector<16x256xf32>
    %c241_i32 = arith.constant 241 : i32
    %55 = tpu.dynamic_rotate %11 by %c241_i32 dim 1 : vector<16x256xf32>, i32 -> vector<16x256xf32>
    %c6 = arith.constant 6 : index
    %c0_25 = arith.constant 0 : index
    %56 = vector.load %arg6[%c6, %c0_25] : memref<27x256xf32, #tpu.memory_space<vmem>>, vector<1x256xf32>
    %57 = vector.broadcast %56 : vector<1x256xf32> to vector<16x256xf32>
    %58 = arith.mulf %55, %57 : vector<16x256xf32>
    %c0_26 = arith.constant 0 : index
    %c6_27 = arith.constant 6 : index
    %59 = vector.load %arg4[%c0_26, %c6_27] : memref<16x27xf32, #tpu.memory_space<vmem>>, vector<16x1xf32>
    %60 = vector.broadcast %59 : vector<16x1xf32> to vector<16x256xf32>
    %61 = arith.mulf %58, %60 : vector<16x256xf32>
    %62 = arith.addf %54, %61 : vector<16x256xf32>
    %c240_i32 = arith.constant 240 : i32
    %63 = tpu.dynamic_rotate %11 by %c240_i32 dim 1 : vector<16x256xf32>, i32 -> vector<16x256xf32>
    %c7 = arith.constant 7 : index
    %c0_28 = arith.constant 0 : index
    %64 = vector.load %arg6[%c7, %c0_28] : memref<27x256xf32, #tpu.memory_space<vmem>>, vector<1x256xf32>
    %65 = vector.broadcast %64 : vector<1x256xf32> to vector<16x256xf32>
    %66 = arith.mulf %63, %65 : vector<16x256xf32>
    %c0_29 = arith.constant 0 : index
    %c7_30 = arith.constant 7 : index
    %67 = vector.load %arg4[%c0_29, %c7_30] : memref<16x27xf32, #tpu.memory_space<vmem>>, vector<16x1xf32>
    %68 = vector.broadcast %67 : vector<16x1xf32> to vector<16x256xf32>
    %69 = arith.mulf %66, %68 : vector<16x256xf32>
    %70 = arith.addf %62, %69 : vector<16x256xf32>
    %c239_i32 = arith.constant 239 : i32
    %71 = tpu.dynamic_rotate %11 by %c239_i32 dim 1 : vector<16x256xf32>, i32 -> vector<16x256xf32>
    %c8 = arith.constant 8 : index
    %c0_31 = arith.constant 0 : index
    %72 = vector.load %arg6[%c8, %c0_31] : memref<27x256xf32, #tpu.memory_space<vmem>>, vector<1x256xf32>
    %73 = vector.broadcast %72 : vector<1x256xf32> to vector<16x256xf32>
    %74 = arith.mulf %71, %73 : vector<16x256xf32>
    %c0_32 = arith.constant 0 : index
    %c8_33 = arith.constant 8 : index
    %75 = vector.load %arg4[%c0_32, %c8_33] : memref<16x27xf32, #tpu.memory_space<vmem>>, vector<16x1xf32>
    %76 = vector.broadcast %75 : vector<16x1xf32> to vector<16x256xf32>
    %77 = arith.mulf %74, %76 : vector<16x256xf32>
    %78 = arith.addf %70, %77 : vector<16x256xf32>
    %c0_34 = arith.constant 0 : index
    %c0_35 = arith.constant 0 : index
    %79 = vector.load %arg5[%c0_34, %c0_35] : memref<16x3xf32, #tpu.memory_space<vmem>>, vector<16x1xf32>
    %80 = vector.broadcast %79 : vector<16x1xf32> to vector<16x256xf32>
    %81 = arith.addf %78, %80 : vector<16x256xf32>
    %cst_36 = arith.constant 0.000000e+00 : f32
    %82 = vector.broadcast %cst_36 : f32 to vector<16x256xf32>
    %83 = arith.cmpf ogt, %81, %82 : vector<16x256xf32>
    %cst_37 = arith.constant 2.000000e-01 : f32
    %84 = vector.broadcast %cst_37 : f32 to vector<16x256xf32>
    %85 = arith.mulf %84, %81 : vector<16x256xf32>
    %86 = arith.select %83, %81, %85 : vector<16x256xi1>, vector<16x256xf32>
    %87 = arith.addf %11, %86 : vector<16x256xf32>
    %c34_i32 = arith.constant 34 : i32
    %88 = tpu.dynamic_rotate %11 by %c34_i32 dim 1 : vector<16x256xf32>, i32 -> vector<16x256xf32>
    %c9 = arith.constant 9 : index
    %c0_38 = arith.constant 0 : index
    %89 = vector.load %arg6[%c9, %c0_38] : memref<27x256xf32, #tpu.memory_space<vmem>>, vector<1x256xf32>
    %90 = vector.broadcast %89 : vector<1x256xf32> to vector<16x256xf32>
    %91 = arith.mulf %88, %90 : vector<16x256xf32>
    %c0_39 = arith.constant 0 : index
    %c9_40 = arith.constant 9 : index
    %92 = vector.load %arg4[%c0_39, %c9_40] : memref<16x27xf32, #tpu.memory_space<vmem>>, vector<16x1xf32>
    %93 = vector.broadcast %92 : vector<16x1xf32> to vector<16x256xf32>
    %94 = arith.mulf %91, %93 : vector<16x256xf32>
    %c32_i32 = arith.constant 32 : i32
    %95 = tpu.dynamic_rotate %11 by %c32_i32 dim 1 : vector<16x256xf32>, i32 -> vector<16x256xf32>
    %c10 = arith.constant 10 : index
    %c0_41 = arith.constant 0 : index
    %96 = vector.load %arg6[%c10, %c0_41] : memref<27x256xf32, #tpu.memory_space<vmem>>, vector<1x256xf32>
    %97 = vector.broadcast %96 : vector<1x256xf32> to vector<16x256xf32>
    %98 = arith.mulf %95, %97 : vector<16x256xf32>
    %c0_42 = arith.constant 0 : index
    %c10_43 = arith.constant 10 : index
    %99 = vector.load %arg4[%c0_42, %c10_43] : memref<16x27xf32, #tpu.memory_space<vmem>>, vector<16x1xf32>
    %100 = vector.broadcast %99 : vector<16x1xf32> to vector<16x256xf32>
    %101 = arith.mulf %98, %100 : vector<16x256xf32>
    %102 = arith.addf %94, %101 : vector<16x256xf32>
    %c30_i32 = arith.constant 30 : i32
    %103 = tpu.dynamic_rotate %11 by %c30_i32 dim 1 : vector<16x256xf32>, i32 -> vector<16x256xf32>
    %c11 = arith.constant 11 : index
    %c0_44 = arith.constant 0 : index
    %104 = vector.load %arg6[%c11, %c0_44] : memref<27x256xf32, #tpu.memory_space<vmem>>, vector<1x256xf32>
    %105 = vector.broadcast %104 : vector<1x256xf32> to vector<16x256xf32>
    %106 = arith.mulf %103, %105 : vector<16x256xf32>
    %c0_45 = arith.constant 0 : index
    %c11_46 = arith.constant 11 : index
    %107 = vector.load %arg4[%c0_45, %c11_46] : memref<16x27xf32, #tpu.memory_space<vmem>>, vector<16x1xf32>
    %108 = vector.broadcast %107 : vector<16x1xf32> to vector<16x256xf32>
    %109 = arith.mulf %106, %108 : vector<16x256xf32>
    %110 = arith.addf %102, %109 : vector<16x256xf32>
    %c2_i32 = arith.constant 2 : i32
    %111 = tpu.dynamic_rotate %11 by %c2_i32 dim 1 : vector<16x256xf32>, i32 -> vector<16x256xf32>
    %c12 = arith.constant 12 : index
    %c0_47 = arith.constant 0 : index
    %112 = vector.load %arg6[%c12, %c0_47] : memref<27x256xf32, #tpu.memory_space<vmem>>, vector<1x256xf32>
    %113 = vector.broadcast %112 : vector<1x256xf32> to vector<16x256xf32>
    %114 = arith.mulf %111, %113 : vector<16x256xf32>
    %c0_48 = arith.constant 0 : index
    %c12_49 = arith.constant 12 : index
    %115 = vector.load %arg4[%c0_48, %c12_49] : memref<16x27xf32, #tpu.memory_space<vmem>>, vector<16x1xf32>
    %116 = vector.broadcast %115 : vector<16x1xf32> to vector<16x256xf32>
    %117 = arith.mulf %114, %116 : vector<16x256xf32>
    %118 = arith.addf %110, %117 : vector<16x256xf32>
    %c0_50 = arith.constant 0 : index
    %c13 = arith.constant 13 : index
    %119 = vector.load %arg4[%c0_50, %c13] : memref<16x27xf32, #tpu.memory_space<vmem>>, vector<16x1xf32>
    %120 = vector.broadcast %119 : vector<16x1xf32> to vector<16x256xf32>
    %121 = arith.mulf %11, %120 : vector<16x256xf32>
    %122 = arith.addf %118, %121 : vector<16x256xf32>
    %c254_i32 = arith.constant 254 : i32
    %123 = tpu.dynamic_rotate %11 by %c254_i32 dim 1 : vector<16x256xf32>, i32 -> vector<16x256xf32>
    %c14 = arith.constant 14 : index
    %c0_51 = arith.constant 0 : index
    %124 = vector.load %arg6[%c14, %c0_51] : memref<27x256xf32, #tpu.memory_space<vmem>>, vector<1x256xf32>
    %125 = vector.broadcast %124 : vector<1x256xf32> to vector<16x256xf32>
    %126 = arith.mulf %123, %125 : vector<16x256xf32>
    %c0_52 = arith.constant 0 : index
    %c14_53 = arith.constant 14 : index
    %127 = vector.load %arg4[%c0_52, %c14_53] : memref<16x27xf32, #tpu.memory_space<vmem>>, vector<16x1xf32>
    %128 = vector.broadcast %127 : vector<16x1xf32> to vector<16x256xf32>
    %129 = arith.mulf %126, %128 : vector<16x256xf32>
    %130 = arith.addf %122, %129 : vector<16x256xf32>
    %c226_i32 = arith.constant 226 : i32
    %131 = tpu.dynamic_rotate %11 by %c226_i32 dim 1 : vector<16x256xf32>, i32 -> vector<16x256xf32>
    %c15 = arith.constant 15 : index
    %c0_54 = arith.constant 0 : index
    %132 = vector.load %arg6[%c15, %c0_54] : memref<27x256xf32, #tpu.memory_space<vmem>>, vector<1x256xf32>
    %133 = vector.broadcast %132 : vector<1x256xf32> to vector<16x256xf32>
    %134 = arith.mulf %131, %133 : vector<16x256xf32>
    %c0_55 = arith.constant 0 : index
    %c15_56 = arith.constant 15 : index
    %135 = vector.load %arg4[%c0_55, %c15_56] : memref<16x27xf32, #tpu.memory_space<vmem>>, vector<16x1xf32>
    %136 = vector.broadcast %135 : vector<16x1xf32> to vector<16x256xf32>
    %137 = arith.mulf %134, %136 : vector<16x256xf32>
    %138 = arith.addf %130, %137 : vector<16x256xf32>
    %c224_i32 = arith.constant 224 : i32
    %139 = tpu.dynamic_rotate %11 by %c224_i32 dim 1 : vector<16x256xf32>, i32 -> vector<16x256xf32>
    %c16 = arith.constant 16 : index
    %c0_57 = arith.constant 0 : index
    %140 = vector.load %arg6[%c16, %c0_57] : memref<27x256xf32, #tpu.memory_space<vmem>>, vector<1x256xf32>
    %141 = vector.broadcast %140 : vector<1x256xf32> to vector<16x256xf32>
    %142 = arith.mulf %139, %141 : vector<16x256xf32>
    %c0_58 = arith.constant 0 : index
    %c16_59 = arith.constant 16 : index
    %143 = vector.load %arg4[%c0_58, %c16_59] : memref<16x27xf32, #tpu.memory_space<vmem>>, vector<16x1xf32>
    %144 = vector.broadcast %143 : vector<16x1xf32> to vector<16x256xf32>
    %145 = arith.mulf %142, %144 : vector<16x256xf32>
    %146 = arith.addf %138, %145 : vector<16x256xf32>
    %c222_i32 = arith.constant 222 : i32
    %147 = tpu.dynamic_rotate %11 by %c222_i32 dim 1 : vector<16x256xf32>, i32 -> vector<16x256xf32>
    %c17 = arith.constant 17 : index
    %c0_60 = arith.constant 0 : index
    %148 = vector.load %arg6[%c17, %c0_60] : memref<27x256xf32, #tpu.memory_space<vmem>>, vector<1x256xf32>
    %149 = vector.broadcast %148 : vector<1x256xf32> to vector<16x256xf32>
    %150 = arith.mulf %147, %149 : vector<16x256xf32>
    %c0_61 = arith.constant 0 : index
    %c17_62 = arith.constant 17 : index
    %151 = vector.load %arg4[%c0_61, %c17_62] : memref<16x27xf32, #tpu.memory_space<vmem>>, vector<16x1xf32>
    %152 = vector.broadcast %151 : vector<16x1xf32> to vector<16x256xf32>
    %153 = arith.mulf %150, %152 : vector<16x256xf32>
    %154 = arith.addf %146, %153 : vector<16x256xf32>
    %c0_63 = arith.constant 0 : index
    %c1_64 = arith.constant 1 : index
    %155 = vector.load %arg5[%c0_63, %c1_64] : memref<16x3xf32, #tpu.memory_space<vmem>>, vector<16x1xf32>
    %156 = vector.broadcast %155 : vector<16x1xf32> to vector<16x256xf32>
    %157 = arith.addf %154, %156 : vector<16x256xf32>
    %cst_65 = arith.constant 0.000000e+00 : f32
    %158 = vector.broadcast %cst_65 : f32 to vector<16x256xf32>
    %159 = arith.cmpf ogt, %157, %158 : vector<16x256xf32>
    %cst_66 = arith.constant 2.000000e-01 : f32
    %160 = vector.broadcast %cst_66 : f32 to vector<16x256xf32>
    %161 = arith.mulf %160, %157 : vector<16x256xf32>
    %162 = arith.select %159, %157, %161 : vector<16x256xi1>, vector<16x256xf32>
    %163 = arith.addf %87, %162 : vector<16x256xf32>
    %c51_i32 = arith.constant 51 : i32
    %164 = tpu.dynamic_rotate %11 by %c51_i32 dim 1 : vector<16x256xf32>, i32 -> vector<16x256xf32>
    %c18 = arith.constant 18 : index
    %c0_67 = arith.constant 0 : index
    %165 = vector.load %arg6[%c18, %c0_67] : memref<27x256xf32, #tpu.memory_space<vmem>>, vector<1x256xf32>
    %166 = vector.broadcast %165 : vector<1x256xf32> to vector<16x256xf32>
    %167 = arith.mulf %164, %166 : vector<16x256xf32>
    %c0_68 = arith.constant 0 : index
    %c18_69 = arith.constant 18 : index
    %168 = vector.load %arg4[%c0_68, %c18_69] : memref<16x27xf32, #tpu.memory_space<vmem>>, vector<16x1xf32>
    %169 = vector.broadcast %168 : vector<16x1xf32> to vector<16x256xf32>
    %170 = arith.mulf %167, %169 : vector<16x256xf32>
    %c48_i32 = arith.constant 48 : i32
    %171 = tpu.dynamic_rotate %11 by %c48_i32 dim 1 : vector<16x256xf32>, i32 -> vector<16x256xf32>
    %c19 = arith.constant 19 : index
    %c0_70 = arith.constant 0 : index
    %172 = vector.load %arg6[%c19, %c0_70] : memref<27x256xf32, #tpu.memory_space<vmem>>, vector<1x256xf32>
    %173 = vector.broadcast %172 : vector<1x256xf32> to vector<16x256xf32>
    %174 = arith.mulf %171, %173 : vector<16x256xf32>
    %c0_71 = arith.constant 0 : index
    %c19_72 = arith.constant 19 : index
    %175 = vector.load %arg4[%c0_71, %c19_72] : memref<16x27xf32, #tpu.memory_space<vmem>>, vector<16x1xf32>
    %176 = vector.broadcast %175 : vector<16x1xf32> to vector<16x256xf32>
    %177 = arith.mulf %174, %176 : vector<16x256xf32>
    %178 = arith.addf %170, %177 : vector<16x256xf32>
    %c45_i32 = arith.constant 45 : i32
    %179 = tpu.dynamic_rotate %11 by %c45_i32 dim 1 : vector<16x256xf32>, i32 -> vector<16x256xf32>
    %c20 = arith.constant 20 : index
    %c0_73 = arith.constant 0 : index
    %180 = vector.load %arg6[%c20, %c0_73] : memref<27x256xf32, #tpu.memory_space<vmem>>, vector<1x256xf32>
    %181 = vector.broadcast %180 : vector<1x256xf32> to vector<16x256xf32>
    %182 = arith.mulf %179, %181 : vector<16x256xf32>
    %c0_74 = arith.constant 0 : index
    %c20_75 = arith.constant 20 : index
    %183 = vector.load %arg4[%c0_74, %c20_75] : memref<16x27xf32, #tpu.memory_space<vmem>>, vector<16x1xf32>
    %184 = vector.broadcast %183 : vector<16x1xf32> to vector<16x256xf32>
    %185 = arith.mulf %182, %184 : vector<16x256xf32>
    %186 = arith.addf %178, %185 : vector<16x256xf32>
    %c3_i32 = arith.constant 3 : i32
    %187 = tpu.dynamic_rotate %11 by %c3_i32 dim 1 : vector<16x256xf32>, i32 -> vector<16x256xf32>
    %c21 = arith.constant 21 : index
    %c0_76 = arith.constant 0 : index
    %188 = vector.load %arg6[%c21, %c0_76] : memref<27x256xf32, #tpu.memory_space<vmem>>, vector<1x256xf32>
    %189 = vector.broadcast %188 : vector<1x256xf32> to vector<16x256xf32>
    %190 = arith.mulf %187, %189 : vector<16x256xf32>
    %c0_77 = arith.constant 0 : index
    %c21_78 = arith.constant 21 : index
    %191 = vector.load %arg4[%c0_77, %c21_78] : memref<16x27xf32, #tpu.memory_space<vmem>>, vector<16x1xf32>
    %192 = vector.broadcast %191 : vector<16x1xf32> to vector<16x256xf32>
    %193 = arith.mulf %190, %192 : vector<16x256xf32>
    %194 = arith.addf %186, %193 : vector<16x256xf32>
    %c0_79 = arith.constant 0 : index
    %c22 = arith.constant 22 : index
    %195 = vector.load %arg4[%c0_79, %c22] : memref<16x27xf32, #tpu.memory_space<vmem>>, vector<16x1xf32>
    %196 = vector.broadcast %195 : vector<16x1xf32> to vector<16x256xf32>
    %197 = arith.mulf %11, %196 : vector<16x256xf32>
    %198 = arith.addf %194, %197 : vector<16x256xf32>
    %c253_i32 = arith.constant 253 : i32
    %199 = tpu.dynamic_rotate %11 by %c253_i32 dim 1 : vector<16x256xf32>, i32 -> vector<16x256xf32>
    %c23 = arith.constant 23 : index
    %c0_80 = arith.constant 0 : index
    %200 = vector.load %arg6[%c23, %c0_80] : memref<27x256xf32, #tpu.memory_space<vmem>>, vector<1x256xf32>
    %201 = vector.broadcast %200 : vector<1x256xf32> to vector<16x256xf32>
    %202 = arith.mulf %199, %201 : vector<16x256xf32>
    %c0_81 = arith.constant 0 : index
    %c23_82 = arith.constant 23 : index
    %203 = vector.load %arg4[%c0_81, %c23_82] : memref<16x27xf32, #tpu.memory_space<vmem>>, vector<16x1xf32>
    %204 = vector.broadcast %203 : vector<16x1xf32> to vector<16x256xf32>
    %205 = arith.mulf %202, %204 : vector<16x256xf32>
    %206 = arith.addf %198, %205 : vector<16x256xf32>
    %c211_i32 = arith.constant 211 : i32
    %207 = tpu.dynamic_rotate %11 by %c211_i32 dim 1 : vector<16x256xf32>, i32 -> vector<16x256xf32>
    %c24 = arith.constant 24 : index
    %c0_83 = arith.constant 0 : index
    %208 = vector.load %arg6[%c24, %c0_83] : memref<27x256xf32, #tpu.memory_space<vmem>>, vector<1x256xf32>
    %209 = vector.broadcast %208 : vector<1x256xf32> to vector<16x256xf32>
    %210 = arith.mulf %207, %209 : vector<16x256xf32>
    %c0_84 = arith.constant 0 : index
    %c24_85 = arith.constant 24 : index
    %211 = vector.load %arg4[%c0_84, %c24_85] : memref<16x27xf32, #tpu.memory_space<vmem>>, vector<16x1xf32>
    %212 = vector.broadcast %211 : vector<16x1xf32> to vector<16x256xf32>
    %213 = arith.mulf %210, %212 : vector<16x256xf32>
    %214 = arith.addf %206, %213 : vector<16x256xf32>
    %c208_i32 = arith.constant 208 : i32
    %215 = tpu.dynamic_rotate %11 by %c208_i32 dim 1 : vector<16x256xf32>, i32 -> vector<16x256xf32>
    %c25 = arith.constant 25 : index
    %c0_86 = arith.constant 0 : index
    %216 = vector.load %arg6[%c25, %c0_86] : memref<27x256xf32, #tpu.memory_space<vmem>>, vector<1x256xf32>
    %217 = vector.broadcast %216 : vector<1x256xf32> to vector<16x256xf32>
    %218 = arith.mulf %215, %217 : vector<16x256xf32>
    %c0_87 = arith.constant 0 : index
    %c25_88 = arith.constant 25 : index
    %219 = vector.load %arg4[%c0_87, %c25_88] : memref<16x27xf32, #tpu.memory_space<vmem>>, vector<16x1xf32>
    %220 = vector.broadcast %219 : vector<16x1xf32> to vector<16x256xf32>
    %221 = arith.mulf %218, %220 : vector<16x256xf32>
    %222 = arith.addf %214, %221 : vector<16x256xf32>
    %c205_i32 = arith.constant 205 : i32
    %223 = tpu.dynamic_rotate %11 by %c205_i32 dim 1 : vector<16x256xf32>, i32 -> vector<16x256xf32>
    %c26 = arith.constant 26 : index
    %c0_89 = arith.constant 0 : index
    %224 = vector.load %arg6[%c26, %c0_89] : memref<27x256xf32, #tpu.memory_space<vmem>>, vector<1x256xf32>
    %225 = vector.broadcast %224 : vector<1x256xf32> to vector<16x256xf32>
    %226 = arith.mulf %223, %225 : vector<16x256xf32>
    %c0_90 = arith.constant 0 : index
    %c26_91 = arith.constant 26 : index
    %227 = vector.load %arg4[%c0_90, %c26_91] : memref<16x27xf32, #tpu.memory_space<vmem>>, vector<16x1xf32>
    %228 = vector.broadcast %227 : vector<16x1xf32> to vector<16x256xf32>
    %229 = arith.mulf %226, %228 : vector<16x256xf32>
    %230 = arith.addf %222, %229 : vector<16x256xf32>
    %c0_92 = arith.constant 0 : index
    %c2_93 = arith.constant 2 : index
    %231 = vector.load %arg5[%c0_92, %c2_93] : memref<16x3xf32, #tpu.memory_space<vmem>>, vector<16x1xf32>
    %232 = vector.broadcast %231 : vector<16x1xf32> to vector<16x256xf32>
    %233 = arith.addf %230, %232 : vector<16x256xf32>
    %cst_94 = arith.constant 0.000000e+00 : f32
    %234 = vector.broadcast %cst_94 : f32 to vector<16x256xf32>
    %235 = arith.cmpf ogt, %233, %234 : vector<16x256xf32>
    %cst_95 = arith.constant 2.000000e-01 : f32
    %236 = vector.broadcast %cst_95 : f32 to vector<16x256xf32>
    %237 = arith.mulf %236, %233 : vector<16x256xf32>
    %238 = arith.select %235, %233, %237 : vector<16x256xi1>, vector<16x256xf32>
    %239 = arith.addf %163, %238 : vector<16x256xf32>
    %c0_96 = arith.constant 0 : index
    %c0_97 = arith.constant 0 : index
    %240 = vector.load %arg7[%c0_96, %c0_97] : memref<32x16xf32, #tpu.memory_space<vmem>>, vector<32x16xf32>
    %cst_98 = arith.constant dense<0.000000e+00> : vector<32x256xf32>
    %241 = tpu.matmul %240, %239, %cst_98 {dimension_numbers = #tpu.dot_dimension_numbers<[1], [0], [0], [1], [0, 0, 1, 1], [], []>} : vector<32x16xf32>, vector<16x256xf32>, vector<32x256xf32> -> vector<32x256xf32>
    %c0_99 = arith.constant 0 : index
    %c0_100 = arith.constant 0 : index
    %242 = vector.load %arg8[%c0_99, %c0_100] : memref<32x1xf32, #tpu.memory_space<vmem>>, vector<32x1xf32>
    %243 = vector.broadcast %242 : vector<32x1xf32> to vector<32x256xf32>
    %244 = arith.addf %241, %243 : vector<32x256xf32>
    %cst_101 = arith.constant 0.000000e+00 : f32
    %245 = vector.broadcast %cst_101 : f32 to vector<32x256xf32>
    %246 = arith.cmpf ogt, %244, %245 : vector<32x256xf32>
    %cst_102 = arith.constant 2.000000e-01 : f32
    %247 = vector.broadcast %cst_102 : f32 to vector<32x256xf32>
    %248 = arith.mulf %247, %244 : vector<32x256xf32>
    %249 = arith.select %246, %244, %248 : vector<32x256xi1>, vector<32x256xf32>
    %c0_103 = arith.constant 0 : index
    %c0_104 = arith.constant 0 : index
    %c0_105 = arith.constant 0 : index
    %250 = vector.load %arg9[%c0_103, %c0_104, %c0_105] : memref<1x32x256xf32, #tpu.memory_space<vmem>>, vector<1x32x256xf32>
    %251 = vector.shape_cast %250 : vector<1x32x256xf32> to vector<32x256xf32>
    %252 = vector.shape_cast %249 : vector<32x256xf32> to vector<1x32x256xf32>
    tpu.vector_store %arg9[%c0_103, %c0_104, %c0_105], %252 {strides = array<i32>} : memref<1x32x256xf32, #tpu.memory_space<vmem>>, vector<1x32x256xf32>,
    return
  }
  func.func @transform_0(%arg0: i32) -> (i32, i32, i32) {
    %c0_i32 = arith.constant 0 : i32
    %c0_i32_0 = arith.constant 0 : i32
    %c0_i32_1 = arith.constant 0 : i32
    return %arg0, %c0_i32, %c0_i32_0 : i32, i32, i32
  }
  func.func @transform_1(%arg0: i32) -> (i32, i32) {
    %c0_i32 = arith.constant 0 : i32
    %c0_i32_0 = arith.constant 0 : i32
    %c0_i32_1 = arith.constant 0 : i32
    return %c0_i32, %c0_i32_0 : i32, i32
  }
  func.func @transform_2(%arg0: i32) -> (i32, i32) {
    %c0_i32 = arith.constant 0 : i32
    %c0_i32_0 = arith.constant 0 : i32
    %c0_i32_1 = arith.constant 0 : i32
    return %c0_i32, %c0_i32_0 : i32, i32
  }
  func.func @transform_3(%arg0: i32) -> (i32, i32) {
    %c0_i32 = arith.constant 0 : i32
    %c0_i32_0 = arith.constant 0 : i32
    %c0_i32_1 = arith.constant 0 : i32
    return %c0_i32, %c0_i32_0 : i32, i32
  }
  func.func @transform_4(%arg0: i32) -> (i32, i32) {
    %c0_i32 = arith.constant 0 : i32
    %c0_i32_0 = arith.constant 0 : i32
    %c0_i32_1 = arith.constant 0 : i32
    return %c0_i32, %c0_i32_0 : i32, i32
  }
  func.func @transform_5(%arg0: i32) -> (i32, i32) {
    %c0_i32 = arith.constant 0 : i32
    %c0_i32_0 = arith.constant 0 : i32
    %c0_i32_1 = arith.constant 0 : i32
    return %c0_i32, %c0_i32_0 : i32, i32
  }
  func.func @transform_6(%arg0: i32) -> (i32, i32) {
    %c0_i32 = arith.constant 0 : i32
    %c0_i32_0 = arith.constant 0 : i32
    %c0_i32_1 = arith.constant 0 : i32
    return %c0_i32, %c0_i32_0 : i32, i32
  }
  func.func @transform_7(%arg0: i32) -> (i32, i32) {
    %c0_i32 = arith.constant 0 : i32
    %c0_i32_0 = arith.constant 0 : i32
    %c0_i32_1 = arith.constant 0 : i32
    return %c0_i32, %c0_i32_0 : i32, i32
  }
  func.func @transform_8(%arg0: i32) -> (i32, i32, i32) {
    %c0_i32 = arith.constant 0 : i32
    %c0_i32_0 = arith.constant 0 : i32
    %c0_i32_1 = arith.constant 0 : i32
    return %arg0, %c0_i32, %c0_i32_0 : i32, i32, i32
  }
}

</mosaic_0001>

<llo_original>
// kernel: tpu_custom_call.1
$region0: #{tpu_custom_call.1}
  #allocation0 [shape = 'u32[]', space=smem, size = 0x4, offset = 0x4, fixed_abs, tag = 'smem constant byte address 0x4 - core index']
  #allocation1 [shape = 'u32[72,128]{1,0:T(1,128)}', space=vmem, size = 0x9000, scoped, tag = 'internal scratch']
  %s0 = inlined_call_operand.vmem [shape: f32[2,4,256], index: 0, kind: input, shape index: {}]
  %s1 = inlined_call_operand.vmem [shape: f32[16,4], index: 1, kind: input, shape index: {}]
  %s2 = inlined_call_operand.vmem [shape: f32[16,1], index: 2, kind: input, shape index: {}]
  %s3 = inlined_call_operand.vmem [shape: f32[16,27], index: 3, kind: input, shape index: {}]
  %s4 = inlined_call_operand.vmem [shape: f32[16,3], index: 4, kind: input, shape index: {}]
  %s5 = inlined_call_operand.vmem [shape: f32[27,256], index: 5, kind: input, shape index: {}]
  %s6 = inlined_call_operand.vmem [shape: f32[32,16], index: 6, kind: input, shape index: {}]
  %s7 = inlined_call_operand.vmem [shape: f32[32,1], index: 7, kind: input, shape index: {}]
  %s8 = inlined_call_operand.hbm [shape: f32[2,32,256], index: 8, kind: output, shape index: {}]
  %s9 = sld [smem:[#allocation0]]
  $region65: #{tpu_custom_call.1} parent=0
    _
  %s11 = ssub.s32 1, %s9
  %s12 = scalar_select 0, %s11, %s9
  $region1: #{tpu_custom_call.1} parent=0
    #allocation2 [shape = 'u8[65536]{0}', space=vmem, size = 0x10000, scoped, tag = 'output window, operand 0']
    #allocation3 [shape = 's32[2]{0}', space=sflag, size = 0x8, scoped, tag = 'scoped memory for tpu_custom_call.1']
    %13 = vsyncpa [#allocation3], 0
    %s14 = scalar_lea.sflag [#allocation3], 1
    %15 = vsyncpa %s14, 0
    loop: start=0, step=1, limit=4
    $region2: #{tpu_custom_call.1} parent=1 // loop_pre_header
      _
    $region3: #{tpu_custom_call.1} parent=1 // loop_header
      %s17 = sphi 0, %s21
      %p18 = scmp.ge.s32.totalorder %s17, 4
      %s27 = sphi 0, %s29
      %s30 = sphi 0, %s27
      %s31 = sphi 0, %s30
      %s47 = sphi 0, %s31
      %s51 = sphi 0, %s51
      %s53 = sphi 0, %s51
      %s54 = sphi 0, %s53
      %s68 = sphi 0, %s54
      %s72 = sphi 0, %s72
      %s74 = sphi 0, %s72
      %s75 = sphi 0, %s74
      %s89 = sphi 0, %s75
      %s93 = sphi 0, %s93
      %s95 = sphi 0, %s93
      %s96 = sphi 0, %s95
      %s110 = sphi 0, %s96
      %s114 = sphi 0, %s114
      %s116 = sphi 0, %s114
      %s117 = sphi 0, %s116
      %s131 = sphi 0, %s117
      %s135 = sphi 0, %s135
      %s137 = sphi 0, %s135
      %s138 = sphi 0, %s137
      %s152 = sphi 0, %s138
      %s156 = sphi 0, %s156
      %s158 = sphi 0, %s156
      %s159 = sphi 0, %s158
      %s173 = sphi 0, %s159
      %s177 = sphi 0, %s177
      %s179 = sphi 0, %s177
      %s180 = sphi 0, %s179
      %s194 = sphi 0, %s180
      %s200 = sphi 0, %s202
      %s203 = sphi 0, %s200
      %s204 = sphi 0, %s203
      %s220 = sphi 0, %s204
    $region4: #{tpu_custom_call.1} parent=1 // loop_header_branch
      %20 = sbr.rel (%p18) target = $region8
    $region5: #{tpu_custom_call.1} parent=1 // loop_body
      %s22 = ssub.s32 %s17, 1
      %s23 = ssub.s32 %s17, 2
      %s24 = sadd.s32 %s17, 1
      %s25 = ssub.s32 %s17, %s24
      %p26 = scmp.eq.s32.totalorder %s25, 0
      %s28 = sadd.s32 %s27, 1
      %s29 = scalar_select %p26, %s27, %s28
      %p32 = pneg %p26
      %p33 = scmp.eq.s32.totalorder %s17, 1
      %p34 = por %p32, %p33
      %p35 = scmp.ne.s32.totalorder %s27, %s30
      %p36 = scmp.eq.s32.totalorder %s17, 0
      %p37 = por %p35, %p36
      %p38 = scmp.ne.s32.totalorder %s27, %s30
      %p39 = scmp.eq.s32.totalorder %s22, 1
      %p40 = por %p38, %p39
      %p41 = scmp.ne.s32.totalorder %s30, %s31
      %p42 = scmp.eq.s32.totalorder %s22, 0
      %p43 = por %p41, %p42
      %p44 = scmp.ne.s32.totalorder %s30, %s31
      %p45 = scmp.eq.s32.totalorder %s23, 1
      %p46 = por %p44, %p45
      %p48 = scmp.ne.s32.totalorder %s31, %s47
      %p49 = scmp.eq.s32.totalorder %s23, 0
      %p50 = por %p48, %p49
      %s52 = sadd.s32 %s51, 1
      %p55 = scmp.eq.s32.totalorder %s17, 1
      %p56 = scmp.ne.s32.totalorder %s51, %s53
      %p57 = scmp.eq.s32.totalorder %s17, 0
      %p58 = por %p56, %p57
      %p59 = scmp.ne.s32.totalorder %s51, %s53
      %p60 = scmp.eq.s32.totalorder %s22, 1
      %p61 = por %p59, %p60
      %p62 = scmp.ne.s32.totalorder %s53, %s54
      %p63 = scmp.eq.s32.totalorder %s22, 0
      %p64 = por %p62, %p63
      %p65 = scmp.ne.s32.totalorder %s53, %s54
      %p66 = scmp.eq.s32.totalorder %s23, 1
      %p67 = por %p65, %p66
      %p69 = scmp.ne.s32.totalorder %s54, %s68
      %p70 = scmp.eq.s32.totalorder %s23, 0
      %p71 = por %p69, %p70
      %s73 = sadd.s32 %s72, 1
      %p76 = scmp.eq.s32.totalorder %s17, 1
      %p77 = scmp.ne.s32.totalorder %s72, %s74
      %p78 = scmp.eq.s32.totalorder %s17, 0
      %p79 = por %p77, %p78
      %p80 = scmp.ne.s32.totalorder %s72, %s74
      %p81 = scmp.eq.s32.totalorder %s22, 1
      %p82 = por %p80, %p81
      %p83 = scmp.ne.s32.totalorder %s74, %s75
      %p84 = scmp.eq.s32.totalorder %s22, 0
      %p85 = por %p83, %p84
      %p86 = scmp.ne.s32.totalorder %s74, %s75
      %p87 = scmp.eq.s32.totalorder %s23, 1
      %p88 = por %p86, %p87
      %p90 = scmp.ne.s32.totalorder %s75, %s89
      %p91 = scmp.eq.s32.totalorder %s23, 0
      %p92 = por %p90, %p91
      %s94 = sadd.s32 %s93, 1
      %p97 = scmp.eq.s32.totalorder %s17, 1
      %p98 = scmp.ne.s32.totalorder %s93, %s95
      %p99 = scmp.eq.s32.totalorder %s17, 0
      %p100 = por %p98, %p99
      %p101 = scmp.ne.s32.totalorder %s93, %s95
      %p102 = scmp.eq.s32.totalorder %s22, 1
      %p103 = por %p101, %p102
      %p104 = scmp.ne.s32.totalorder %s95, %s96
      %p105 = scmp.eq.s32.totalorder %s22, 0
      %p106 = por %p104, %p105
      %p107 = scmp.ne.s32.totalorder %s95, %s96
      %p108 = scmp.eq.s32.totalorder %s23, 1
      %p109 = por %p107, %p108
      %p111 = scmp.ne.s32.totalorder %s96, %s110
      %p112 = scmp.eq.s32.totalorder %s23, 0
      %p113 = por %p111, %p112
      %s115 = sadd.s32 %s114, 1
      %p118 = scmp.eq.s32.totalorder %s17, 1
      %p119 = scmp.ne.s32.totalorder %s114, %s116
      %p120 = scmp.eq.s32.totalorder %s17, 0
      %p121 = por %p119, %p120
      %p122 = scmp.ne.s32.totalorder %s114, %s116
      %p123 = scmp.eq.s32.totalorder %s22, 1
      %p124 = por %p122, %p123
      %p125 = scmp.ne.s32.totalorder %s116, %s117
      %p126 = scmp.eq.s32.totalorder %s22, 0
      %p127 = por %p125, %p126
      %p128 = scmp.ne.s32.totalorder %s116, %s117
      %p129 = scmp.eq.s32.totalorder %s23, 1
      %p130 = por %p128, %p129
      %p132 = scmp.ne.s32.totalorder %s117, %s131
      %p133 = scmp.eq.s32.totalorder %s23, 0
      %p134 = por %p132, %p133
      %s136 = sadd.s32 %s135, 1
      %p139 = scmp.eq.s32.totalorder %s17, 1
      %p140 = scmp.ne.s32.totalorder %s135, %s137
      %p141 = scmp.eq.s32.totalorder %s17, 0
      %p142 = por %p140, %p141
      %p143 = scmp.ne.s32.totalorder %s135, %s137
      %p144 = scmp.eq.s32.totalorder %s22, 1
      %p145 = por %p143, %p144
      %p146 = scmp.ne.s32.totalorder %s137, %s138
      %p147 = scmp.eq.s32.totalorder %s22, 0
      %p148 = por %p146, %p147
      %p149 = scmp.ne.s32.totalorder %s137, %s138
      %p150 = scmp.eq.s32.totalorder %s23, 1
      %p151 = por %p149, %p150
      %p153 = scmp.ne.s32.totalorder %s138, %s152
      %p154 = scmp.eq.s32.totalorder %s23, 0
      %p155 = por %p153, %p154
      %s157 = sadd.s32 %s156, 1
      %p160 = scmp.eq.s32.totalorder %s17, 1
      %p161 = scmp.ne.s32.totalorder %s156, %s158
      %p162 = scmp.eq.s32.totalorder %s17, 0
      %p163 = por %p161, %p162
      %p164 = scmp.ne.s32.totalorder %s156, %s158
      %p165 = scmp.eq.s32.totalorder %s22, 1
      %p166 = por %p164, %p165
      %p167 = scmp.ne.s32.totalorder %s158, %s159
      %p168 = scmp.eq.s32.totalorder %s22, 0
      %p169 = por %p167, %p168
      %p170 = scmp.ne.s32.totalorder %s158, %s159
      %p171 = scmp.eq.s32.totalorder %s23, 1
      %p172 = por %p170, %p171
      %p174 = scmp.ne.s32.totalorder %s159, %s173
      %p175 = scmp.eq.s32.totalorder %s23, 0
      %p176 = por %p174, %p175
      %s178 = sadd.s32 %s177, 1
      %p181 = scmp.eq.s32.totalorder %s17, 1
      %p182 = scmp.ne.s32.totalorder %s177, %s179
      %p183 = scmp.eq.s32.totalorder %s17, 0
      %p184 = por %p182, %p183
      %p185 = scmp.ne.s32.totalorder %s177, %s179
      %p186 = scmp.eq.s32.totalorder %s22, 1
      %p187 = por %p185, %p186
      %p188 = scmp.ne.s32.totalorder %s179, %s180
      %p189 = scmp.eq.s32.totalorder %s22, 0
      %p190 = por %p188, %p189
      %p191 = scmp.ne.s32.totalorder %s179, %s180
      %p192 = scmp.eq.s32.totalorder %s23, 1
      %p193 = por %p191, %p192
      %p195 = scmp.ne.s32.totalorder %s180, %s194
      %p196 = scmp.eq.s32.totalorder %s23, 0
      %p197 = por %p195, %p196
      %s198 = ssub.s32 %s17, %s24
      %p199 = scmp.eq.s32.totalorder %s198, 0
      %s201 = sadd.s32 %s200, 1
      %s202 = scalar_select %p199, %s200, %s201
      %p205 = pneg %p199
      %p206 = scmp.eq.s32.totalorder %s17, 1
      %p207 = por %p205, %p206
      %p208 = scmp.ne.s32.totalorder %s200, %s203
      %p209 = scmp.eq.s32.totalorder %s17, 0
      %p210 = por %p208, %p209
      %p211 = scmp.ne.s32.totalorder %s200, %s203
      %p212 = scmp.eq.s32.totalorder %s22, 1
      %p213 = por %p211, %p212
      %p214 = scmp.ne.s32.totalorder %s203, %s204
      %p215 = scmp.eq.s32.totalorder %s22, 0
      %p216 = por %p214, %p215
      %p217 = scmp.ne.s32.totalorder %s203, %s204
      %p218 = scmp.eq.s32.totalorder %s23, 1
      %p219 = por %p217, %p218
      %p221 = scmp.ne.s32.totalorder %s204, %s220
      %p222 = scmp.eq.s32.totalorder %s23, 0
      %p223 = por %p221, %p222
      %p224 = scmp.le.s32.totalorder 1, %s17
      %p225 = scmp.lt.s32.totalorder %s17, 3
      %p226 = pnand %p224, %p225
      %p227 = pneg %p226
      // Predicated region
      $region9: #{tpu_custom_call.1} parent=5 // pred_check
        _
      $region10: #{tpu_custom_call.1} parent=5 // pred_check_branch
        %229 = sbr.rel (%p226) target = $region12
      $region11: #{tpu_custom_call.1} parent=5 // pred_region
        %s230 = ssub.s32 %s17, 1
        // Predicated region
        $region13: #{tpu_custom_call.1} parent=11 // pred_check
          %p231 = pneg %p64
        $region14: #{tpu_custom_call.1} parent=11 // pred_check_branch
          %233 = sbr.rel (%p231) target = $region16
        $region15: #{tpu_custom_call.1} parent=11 // pred_region
          _
        $region16: #{tpu_custom_call.1} parent=11 // pred_fallthru
          _
        // Predicated region
        $region17: #{tpu_custom_call.1} parent=11 // pred_check
          %p234 = pneg %p85
        $region18: #{tpu_custom_call.1} parent=11 // pred_check_branch
          %236 = sbr.rel (%p234) target = $region20
        $region19: #{tpu_custom_call.1} parent=11 // pred_region
          _
        $region20: #{tpu_custom_call.1} parent=11 // pred_fallthru
          _
        // Predicated region
        $region21: #{tpu_custom_call.1} parent=11 // pred_check
          %p237 = pneg %p106
        $region22: #{tpu_custom_call.1} parent=11 // pred_check_branch
          %239 = sbr.rel (%p237) target = $region24
        $region23: #{tpu_custom_call.1} parent=11 // pred_region
          _
        $region24: #{tpu_custom_call.1} parent=11 // pred_fallthru
          _
        // Predicated region
        $region25: #{tpu_custom_call.1} parent=11 // pred_check
          %p240 = pneg %p127
        $region26: #{tpu_custom_call.1} parent=11 // pred_check_branch
          %242 = sbr.rel (%p240) target = $region28
        $region27: #{tpu_custom_call.1} parent=11 // pred_region
          _
        $region28: #{tpu_custom_call.1} parent=11 // pred_fallthru
          _
        // Predicated region
        $region29: #{tpu_custom_call.1} parent=11 // pred_check
          %p243 = pneg %p148
        $region30: #{tpu_custom_call.1} parent=11 // pred_check_branch
          %245 = sbr.rel (%p243) target = $region32
        $region31: #{tpu_custom_call.1} parent=11 // pred_region
          _
        $region32: #{tpu_custom_call.1} parent=11 // pred_fallthru
          _
        // Predicated region
        $region33: #{tpu_custom_call.1} parent=11 // pred_check
          %p246 = pneg %p169
        $region34: #{tpu_custom_call.1} parent=11 // pred_check_branch
          %248 = sbr.rel (%p246) target = $region36
        $region35: #{tpu_custom_call.1} parent=11 // pred_region
          _
        $region36: #{tpu_custom_call.1} parent=11 // pred_fallthru
          _
        // Predicated region
        $region37: #{tpu_custom_call.1} parent=11 // pred_check
          %p249 = pneg %p190
        $region38: #{tpu_custom_call.1} parent=11 // pred_check_branch
          %251 = sbr.rel (%p249) target = $region40
        $region39: #{tpu_custom_call.1} parent=11 // pred_region
          _
        $region40: #{tpu_custom_call.1} parent=11 // pred_fallthru
          _
      $region12: #{tpu_custom_call.1} parent=5 // pred_fallthru
        _
      %p252 = scmp.lt.s32.totalorder %s17, 2
      // Predicated region
      $region41: #{tpu_custom_call.1} parent=5 // pred_check
        %p253 = pneg %p252
      $region42: #{tpu_custom_call.1} parent=5 // pred_check_branch
        %255 = sbr.rel (%p253) target = $region44
      $region43: #{tpu_custom_call.1} parent=5 // pred_region
        // Predicated region
        $region45: #{tpu_custom_call.1} parent=43 // pred_check
          %p256 = pneg %p37
        $region46: #{tpu_custom_call.1} parent=43 // pred_check_branch
          %258 = sbr.rel (%p256) target = $region48
        $region47: #{tpu_custom_call.1} parent=43 // pred_region
          %p259 = scmp.lt.s32.totalorder %s17, 1
          %s260 = scalar_select %p259, %s17, 1
          %s261 = smul.addr %s260, 2
          %s262 = smul.addr %s261, 4
          %s263 = scalar_lea.vmem %s0, %s262
        $region48: #{tpu_custom_call.1} parent=43 // pred_fallthru
          _
      $region44: #{tpu_custom_call.1} parent=5 // pred_fallthru
        _
      %p264 = scmp.le.s32.totalorder 1, %s17
      %p265 = scmp.lt.s32.totalorder %s17, 3
      %p266 = pnand %p264, %p265
      %p267 = pneg %p266
      // Predicated region
      $region49: #{tpu_custom_call.1} parent=5 // pred_check
        _
      $region50: #{tpu_custom_call.1} parent=5 // pred_check_branch
        %269 = sbr.rel (%p266) target = $region52
      $region51: #{tpu_custom_call.1} parent=5 // pred_region
        %s270 = ssub.s32 %s17, 1
        %p271 = scmp.lt.s32.totalorder %s22, 1
        %s272 = scalar_select %p271, %s22, 1
        %s273 = smul.addr %s272, 2
        %s274 = smul.addr %s273, 4
        %s275 = scalar_lea.vmem %s0, %s274
        %p276 = pneg %p43
        %p277 = pneg %p40
        %p278 = pneg %p64
        %p279 = pneg %p61
        %p280 = pneg %p85
        %p281 = pneg %p82
        %p282 = pneg %p106
        %p283 = pneg %p103
        %p284 = pneg %p127
        %p285 = pneg %p124
        %p286 = pneg %p148
        %p287 = pneg %p145
        %p288 = pneg %p169
        %p289 = pneg %p166
        %p290 = pneg %p190
        %p291 = pneg %p187
        %p292 = pneg %p216
        %p293 = pneg %p213
        %s294 = sand.u32 %s203, 1
        %s295 = scalar_lea.sflag [#allocation3], %s294
        %s296 = sand.u32 %s203, 1
        %s297 = smul.addr %s296, 64
        %s298 = scalar_lea.vmem [#allocation2], %s297
        %p299 = scmp.lt.s32.totalorder %s22, 1
        %s300 = scalar_select %p299, %s22, 1
        %s301 = smul.addr %s300, 2
        %s302 = smul.addr %s301, 4
        %s303 = scalar_lea.vmem %s0, %s302
        %v304 = vld [vmem:[%s303] sm:$0xff]
        %v305 = vld [vmem:[%s1] sm:$0xff]
        %v306 = vld [vmem:[%s1 + $0x8] sm:$0xff]
        %v307 = vld [vmem:[%s2] sm:$0xff]
        %v308 = vld [vmem:[%s2 + $0x8] sm:$0xff]
        %310 = vset.pattern.permute.xlu0 0
        %311 = vperm.xlu0 %310, %v307
        %v312 = vpop.permute.xlu0 %311
        %315 = vset.pattern.permute.xlu0 0
        %316 = vperm.xlu0 %315, %v308
        %v317 = vpop.permute.xlu0 %316
        %320 = vst [vmem:[#allocation1] ss:$2 sm:$0xff] %v304
        %v321 = vld.sshfl [vmem:[#allocation1] sm:$0xff pattern:$0x75316420]
        %v322 = vld.sshfl [vmem:[#allocation1 + $0x8] sm:$0xff pattern:$0x75316420]
        %vm323 = vcmask 31744
        %v325 = vsel %vm323, %v305, 0
        %v328 = vsel %vm323, %v306, 0
        %vm330 = vcmask 1043456
        %v331 = vsel %vm330, %v321, 0
        %v333 = vsel %vm330, %v322, 0
        %335 = vmatpush.msra.mxu0 0.0
        %336 = vmatpush.msra.mxu0 0.0
        %337 = vmatpush.msra.mxu0 0.0
        %338 = vmatpush.msra.mxu0 0.0
        %339 = vmatpush.msra.mxu0 0.0
        %340 = vmatpush.msra.mxu0 0.0
        %341 = vmatpush.msra.mxu0 0.0
        %342 = vmatpush.msra.mxu0 0.0
        %343 = vmatpush.msra.mxu0 0.0
        %344 = vmatpush.msra.mxu0 0.0
        %345 = vmatpush.msra.mxu0 0.0
        %346 = vmatpush.msra.mxu0 0.0
        %347 = vmatpush.msra.mxu0 0.0
        %348 = vmatpush.msra.mxu0 0.0
        %349 = vmatpush.msra.mxu0 0.0
        %350 = vmatpush.msra.mxu0 %v331
        %351 = vmatmul.f32.gmra.mxu0 %v325
        %v352 = vpop.f32.mrf.mxu0
        %v353 = vadd.f32 %v312, %v352
        %354 = vmatmul.f32.gmra.mxu0 %v328
        %v355 = vpop.f32.mrf.mxu0
        %v356 = vadd.f32 %v317, %v355
        %357 = vdwg.mxu0
        %358 = vmatpush.msra.mxu0 0.0
        %359 = vmatpush.msra.mxu0 0.0
        %360 = vmatpush.msra.mxu0 0.0
        %361 = vmatpush.msra.mxu0 0.0
        %362 = vmatpush.msra.mxu0 0.0
        %363 = vmatpush.msra.mxu0 0.0
        %364 = vmatpush.msra.mxu0 0.0
        %365 = vmatpush.msra.mxu0 0.0
        %366 = vmatpush.msra.mxu0 0.0
        %367 = vmatpush.msra.mxu0 0.0
        %368 = vmatpush.msra.mxu0 0.0
        %369 = vmatpush.msra.mxu0 0.0
        %370 = vmatpush.msra.mxu0 0.0
        %371 = vmatpush.msra.mxu0 0.0
        %372 = vmatpush.msra.mxu0 0.0
        %373 = vmatpush.msra.mxu0 %v333
        %374 = vmatmul.f32.gmra.mxu0 %v325
        %v375 = vpop.f32.mrf.mxu0
        %v376 = vadd.f32 %v312, %v375
        %377 = vmatmul.f32.gmra.mxu0 %v328
        %v378 = vpop.f32.mrf.mxu0
        %v379 = vadd.f32 %v317, %v378
        %380 = vdwg.mxu0
        %vm381 = vcmp.gt.f32.partialorder %v353, 0.0
        %vm382 = vcmp.gt.f32.partialorder %v376, 0.0
        %vm383 = vcmp.gt.f32.partialorder %v356, 0.0
        %vm384 = vcmp.gt.f32.partialorder %v379, 0.0
        %v385 = vmul.f32 %v353, 0.2
        %v386 = vmul.f32 %v376, 0.2
        %v387 = vmul.f32 %v356, 0.2
        %v388 = vmul.f32 %v379, 0.2
        %v389 = vsel %vm381, %v353, %v385
        %v390 = vsel %vm382, %v376, %v386
        %v391 = vsel %vm383, %v356, %v387
        %v392 = vsel %vm384, %v379, %v388
        %393 = vrot.lane.b32.xlu0 %v389, 17
        %v394 = vpop.permute.xlu0 %393
        %395 = vrot.lane.b32.xlu0 %v391, 17
        %v396 = vpop.permute.xlu0 %395
        %397 = vrot.lane.b32.xlu0 %v390, 17
        %v398 = vpop.permute.xlu0 %397
        %399 = vrot.lane.b32.xlu0 %v392, 17
        %v400 = vpop.permute.xlu0 %399
        %v401 = vlaneseq
        %v402 = vand.u32 %v401, 127
        %vm403 = vcmp.lt.s32.totalorder %v402, 17
        %v404 = vsel %vm403, %v394, %v398
        %v405 = vsel %vm403, %v396, %v400
        %v406 = vsel %vm403, %v398, %v394
        %v407 = vsel %vm403, %v400, %v396
        %v408 = vld [vmem:[%s5] ss:$8 sm:$0x3]
        %v410 = vperm.slane %v408, 0
        %v411 = vperm.slane %v408, 1
        %v414 = vmul.f32 %v406, %v410
        %v415 = vmul.f32 %v404, %v411
        %v416 = vmul.f32 %v407, %v410
        %v417 = vmul.f32 %v405, %v411
        %v418 = vld [vmem:[%s3] sm:$0xff]
        %v419 = vld [vmem:[%s3 + $0x8] sm:$0xff]
        %421 = vset.pattern.permute.xlu0 0
        %422 = vperm.xlu0 %421, %v418
        %v423 = vpop.permute.xlu0 %422
        %426 = vset.pattern.permute.xlu0 0
        %427 = vperm.xlu0 %426, %v419
        %v428 = vpop.permute.xlu0 %427
        %v430 = vmul.f32 %v414, %v423
        %v431 = vmul.f32 %v415, %v423
        %v432 = vmul.f32 %v416, %v428
        %v433 = vmul.f32 %v417, %v428
        %434 = vrot.lane.b32.xlu0 %v389, 16
        %v435 = vpop.permute.xlu0 %434
        %436 = vrot.lane.b32.xlu0 %v391, 16
        %v437 = vpop.permute.xlu0 %436
        %438 = vrot.lane.b32.xlu0 %v390, 16
        %v439 = vpop.permute.xlu0 %438
        %440 = vrot.lane.b32.xlu0 %v392, 16
        %v441 = vpop.permute.xlu0 %440
        %vm442 = vcmp.lt.s32.totalorder %v402, 16
        %v443 = vsel %vm442, %v435, %v439
        %v444 = vsel %vm442, %v437, %v441
        %v445 = vsel %vm442, %v439, %v435
        %v446 = vsel %vm442, %v441, %v437
        %s447 = scalar_lea.vmem %s5, 1
        %v448 = vld [vmem:[%s447] ss:$8 sm:$0x3]
        %v450 = vperm.slane %v448, 0
        %v451 = vperm.slane %v448, 1
        %v454 = vmul.f32 %v445, %v450
        %v455 = vmul.f32 %v443, %v451
        %v456 = vmul.f32 %v446, %v450
        %v457 = vmul.f32 %v444, %v451
        %458 = vset.pattern.permute.xlu0 1
        %459 = vperm.xlu0 %458, %v418
        %v460 = vpop.permute.xlu0 %459
        %462 = vset.pattern.permute.xlu0 1
        %463 = vperm.xlu0 %462, %v419
        %v464 = vpop.permute.xlu0 %463
        %v466 = vmul.f32 %v454, %v460
        %v467 = vmul.f32 %v455, %v460
        %v468 = vmul.f32 %v456, %v464
        %v469 = vmul.f32 %v457, %v464
        %v470 = vadd.f32 %v430, %v466
        %v471 = vadd.f32 %v431, %v467
        %v472 = vadd.f32 %v432, %v468
        %v473 = vadd.f32 %v433, %v469
        %474 = vrot.lane.b32.xlu0 %v389, 15
        %v475 = vpop.permute.xlu0 %474
        %476 = vrot.lane.b32.xlu0 %v391, 15
        %v477 = vpop.permute.xlu0 %476
        %478 = vrot.lane.b32.xlu0 %v390, 15
        %v479 = vpop.permute.xlu0 %478
        %480 = vrot.lane.b32.xlu0 %v392, 15
        %v481 = vpop.permute.xlu0 %480
        %vm482 = vcmp.lt.s32.totalorder %v402, 15
        %v483 = vsel %vm482, %v475, %v479
        %v484 = vsel %vm482, %v477, %v481
        %v485 = vsel %vm482, %v479, %v475
        %v486 = vsel %vm482, %v481, %v477
        %s487 = scalar_lea.vmem %s5, 2
        %v488 = vld [vmem:[%s487] ss:$8 sm:$0x3]
        %v490 = vperm.slane %v488, 0
        %v491 = vperm.slane %v488, 1
        %v494 = vmul.f32 %v485, %v490
        %v495 = vmul.f32 %v483, %v491
        %v496 = vmul.f32 %v486, %v490
        %v497 = vmul.f32 %v484, %v491
        %498 = vset.pattern.permute.xlu0 2
        %499 = vperm.xlu0 %498, %v418
        %v500 = vpop.permute.xlu0 %499
        %502 = vset.pattern.permute.xlu0 2
        %503 = vperm.xlu0 %502, %v419
        %v504 = vpop.permute.xlu0 %503
        %v506 = vmul.f32 %v494, %v500
        %v507 = vmul.f32 %v495, %v500
        %v508 = vmul.f32 %v496, %v504
        %v509 = vmul.f32 %v497, %v504
        %v510 = vadd.f32 %v470, %v506
        %v511 = vadd.f32 %v471, %v507
        %v512 = vadd.f32 %v472, %v508
        %v513 = vadd.f32 %v473, %v509
        %514 = vrot.lane.b32.xlu0 %v389, 1
        %v515 = vpop.permute.xlu0 %514
        %516 = vrot.lane.b32.xlu0 %v391, 1
        %v517 = vpop.permute.xlu0 %516
        %518 = vrot.lane.b32.xlu0 %v390, 1
        %v519 = vpop.permute.xlu0 %518
        %520 = vrot.lane.b32.xlu0 %v392, 1
        %v521 = vpop.permute.xlu0 %520
        %vm522 = vcmp.lt.s32.totalorder %v402, 1
        %v523 = vsel %vm522, %v515, %v519
        %v524 = vsel %vm522, %v517, %v521
        %v525 = vsel %vm522, %v519, %v515
        %v526 = vsel %vm522, %v521, %v517
        %s527 = scalar_lea.vmem %s5, 3
        %v528 = vld [vmem:[%s527] ss:$8 sm:$0x3]
        %v530 = vperm.slane %v528, 0
        %v531 = vperm.slane %v528, 1
        %v534 = vmul.f32 %v525, %v530
        %v535 = vmul.f32 %v523, %v531
        %v536 = vmul.f32 %v526, %v530
        %v537 = vmul.f32 %v524, %v531
        %538 = vset.pattern.permute.xlu0 3
        %539 = vperm.xlu0 %538, %v418
        %v540 = vpop.permute.xlu0 %539
        %542 = vset.pattern.permute.xlu0 3
        %543 = vperm.xlu0 %542, %v419
        %v544 = vpop.permute.xlu0 %543
        %v546 = vmul.f32 %v534, %v540
        %v547 = vmul.f32 %v535, %v540
        %v548 = vmul.f32 %v536, %v544
        %v549 = vmul.f32 %v537, %v544
        %v550 = vadd.f32 %v510, %v546
        %v551 = vadd.f32 %v511, %v547
        %v552 = vadd.f32 %v512, %v548
        %v553 = vadd.f32 %v513, %v549
        %554 = vset.pattern.permute.xlu0 4
        %555 = vperm.xlu0 %554, %v418
        %v556 = vpop.permute.xlu0 %555
        %558 = vset.pattern.permute.xlu0 4
        %559 = vperm.xlu0 %558, %v419
        %v560 = vpop.permute.xlu0 %559
        %v562 = vmul.f32 %v389, %v556
        %v563 = vmul.f32 %v390, %v556
        %v564 = vmul.f32 %v391, %v560
        %v565 = vmul.f32 %v392, %v560
        %v566 = vadd.f32 %v550, %v562
        %v567 = vadd.f32 %v551, %v563
        %v568 = vadd.f32 %v552, %v564
        %v569 = vadd.f32 %v553, %v565
        %570 = vrot.lane.b32.xlu0 %v389, 127
        %v571 = vpop.permute.xlu0 %570
        %572 = vrot.lane.b32.xlu0 %v391, 127
        %v573 = vpop.permute.xlu0 %572
        %574 = vrot.lane.b32.xlu0 %v390, 127
        %v575 = vpop.permute.xlu0 %574
        %576 = vrot.lane.b32.xlu0 %v392, 127
        %v577 = vpop.permute.xlu0 %576
        %vm578 = vcmp.lt.s32.totalorder %v402, 127
        %v579 = vsel %vm578, %v571, %v575
        %v580 = vsel %vm578, %v573, %v577
        %v581 = vsel %vm578, %v575, %v571
        %v582 = vsel %vm578, %v577, %v573
        %s583 = scalar_lea.vmem %s5, 5
        %v584 = vld [vmem:[%s583] ss:$8 sm:$0x3]
        %v586 = vperm.slane %v584, 0
        %v587 = vperm.slane %v584, 1
        %v590 = vmul.f32 %v579, %v586
        %v591 = vmul.f32 %v581, %v587
        %v592 = vmul.f32 %v580, %v586
        %v593 = vmul.f32 %v582, %v587
        %594 = vset.pattern.permute.xlu0 5
        %595 = vperm.xlu0 %594, %v418
        %v596 = vpop.permute.xlu0 %595
        %598 = vset.pattern.permute.xlu0 5
        %599 = vperm.xlu0 %598, %v419
        %v600 = vpop.permute.xlu0 %599
        %v602 = vmul.f32 %v590, %v596
        %v603 = vmul.f32 %v591, %v596
        %v604 = vmul.f32 %v592, %v600
        %v605 = vmul.f32 %v593, %v600
        %v606 = vadd.f32 %v566, %v602
        %v607 = vadd.f32 %v567, %v603
        %v608 = vadd.f32 %v568, %v604
        %v609 = vadd.f32 %v569, %v605
        %610 = vrot.lane.b32.xlu0 %v389, 113
        %v611 = vpop.permute.xlu0 %610
        %612 = vrot.lane.b32.xlu0 %v391, 113
        %v613 = vpop.permute.xlu0 %612
        %614 = vrot.lane.b32.xlu0 %v390, 113
        %v615 = vpop.permute.xlu0 %614
        %616 = vrot.lane.b32.xlu0 %v392, 113
        %v617 = vpop.permute.xlu0 %616
        %vm618 = vcmp.lt.s32.totalorder %v402, 113
        %v619 = vsel %vm618, %v611, %v615
        %v620 = vsel %vm618, %v613, %v617
        %v621 = vsel %vm618, %v615, %v611
        %v622 = vsel %vm618, %v617, %v613
        %s623 = scalar_lea.vmem %s5, 6
        %v624 = vld [vmem:[%s623] ss:$8 sm:$0x3]
        %v626 = vperm.slane %v624, 0
        %v627 = vperm.slane %v624, 1
        %v630 = vmul.f32 %v619, %v626
        %v631 = vmul.f32 %v621, %v627
        %v632 = vmul.f32 %v620, %v626
        %v633 = vmul.f32 %v622, %v627
        %634 = vset.pattern.permute.xlu0 6
        %635 = vperm.xlu0 %634, %v418
        %v636 = vpop.permute.xlu0 %635
        %638 = vset.pattern.permute.xlu0 6
        %639 = vperm.xlu0 %638, %v419
        %v640 = vpop.permute.xlu0 %639
        %v642 = vmul.f32 %v630, %v636
        %v643 = vmul.f32 %v631, %v636
        %v644 = vmul.f32 %v632, %v640
        %v645 = vmul.f32 %v633, %v640
        %v646 = vadd.f32 %v606, %v642
        %v647 = vadd.f32 %v607, %v643
        %v648 = vadd.f32 %v608, %v644
        %v649 = vadd.f32 %v609, %v645
        %650 = vrot.lane.b32.xlu0 %v389, 112
        %v651 = vpop.permute.xlu0 %650
        %652 = vrot.lane.b32.xlu0 %v391, 112
        %v653 = vpop.permute.xlu0 %652
        %654 = vrot.lane.b32.xlu0 %v390, 112
        %v655 = vpop.permute.xlu0 %654
        %656 = vrot.lane.b32.xlu0 %v392, 112
        %v657 = vpop.permute.xlu0 %656
        %vm658 = vcmp.lt.s32.totalorder %v402, 112
        %v659 = vsel %vm658, %v651, %v655
        %v660 = vsel %vm658, %v653, %v657
        %v661 = vsel %vm658, %v655, %v651
        %v662 = vsel %vm658, %v657, %v653
        %s663 = scalar_lea.vmem %s5, 7
        %v664 = vld [vmem:[%s663] ss:$8 sm:$0x3]
        %v666 = vperm.slane %v664, 0
        %v667 = vperm.slane %v664, 1
        %v670 = vmul.f32 %v659, %v666
        %v671 = vmul.f32 %v661, %v667
        %v672 = vmul.f32 %v660, %v666
        %v673 = vmul.f32 %v662, %v667
        %674 = vset.pattern.permute.xlu0 7
        %675 = vperm.xlu0 %674, %v418
        %v676 = vpop.permute.xlu0 %675
        %678 = vset.pattern.permute.xlu0 7
        %679 = vperm.xlu0 %678, %v419
        %v680 = vpop.permute.xlu0 %679
        %v682 = vmul.f32 %v670, %v676
        %v683 = vmul.f32 %v671, %v676
        %v684 = vmul.f32 %v672, %v680
        %v685 = vmul.f32 %v673, %v680
        %v686 = vadd.f32 %v646, %v682
        %v687 = vadd.f32 %v647, %v683
        %v688 = vadd.f32 %v648, %v684
        %v689 = vadd.f32 %v649, %v685
        %690 = vrot.lane.b32.xlu0 %v389, 111
        %v691 = vpop.permute.xlu0 %690
        %692 = vrot.lane.b32.xlu0 %v391, 111
        %v693 = vpop.permute.xlu0 %692
        %694 = vrot.lane.b32.xlu0 %v390, 111
        %v695 = vpop.permute.xlu0 %694
        %696 = vrot.lane.b32.xlu0 %v392, 111
        %v697 = vpop.permute.xlu0 %696
        %vm698 = vcmp.lt.s32.totalorder %v402, 111
        %v699 = vsel %vm698, %v691, %v695
        %v700 = vsel %vm698, %v693, %v697
        %v701 = vsel %vm698, %v695, %v691
        %v702 = vsel %vm698, %v697, %v693
        %s703 = scalar_lea.vmem %s5, 16
        %v704 = vld [vmem:[%s703] ss:$8 sm:$0x3]
        %v706 = vperm.slane %v704, 0
        %v707 = vperm.slane %v704, 1
        %v710 = vmul.f32 %v699, %v706
        %v711 = vmul.f32 %v701, %v707
        %v712 = vmul.f32 %v700, %v706
        %v713 = vmul.f32 %v702, %v707
        %714 = vset.pattern.permute.xlu0 8
        %715 = vperm.xlu0 %714, %v418
        %v716 = vpop.permute.xlu0 %715
        %718 = vset.pattern.permute.xlu0 8
        %719 = vperm.xlu0 %718, %v419
        %v720 = vpop.permute.xlu0 %719
        %v722 = vmul.f32 %v710, %v716
        %v723 = vmul.f32 %v711, %v716
        %v724 = vmul.f32 %v712, %v720
        %v725 = vmul.f32 %v713, %v720
        %v726 = vadd.f32 %v686, %v722
        %v727 = vadd.f32 %v687, %v723
        %v728 = vadd.f32 %v688, %v724
        %v729 = vadd.f32 %v689, %v725
        %v730 = vld [vmem:[%s4] sm:$0xff]
        %v731 = vld [vmem:[%s4 + $0x8] sm:$0xff]
        %733 = vset.pattern.permute.xlu0 0
        %734 = vperm.xlu0 %733, %v730
        %v735 = vpop.permute.xlu0 %734
        %738 = vset.pattern.permute.xlu0 0
        %739 = vperm.xlu0 %738, %v731
        %v740 = vpop.permute.xlu0 %739
        %v742 = vadd.f32 %v726, %v735
        %v743 = vadd.f32 %v727, %v735
        %v744 = vadd.f32 %v728, %v740
        %v745 = vadd.f32 %v729, %v740
        %vm746 = vcmp.gt.f32.partialorder %v742, 0.0
        %vm747 = vcmp.gt.f32.partialorder %v743, 0.0
        %vm748 = vcmp.gt.f32.partialorder %v744, 0.0
        %vm749 = vcmp.gt.f32.partialorder %v745, 0.0
        %v750 = vmul.f32 %v742, 0.2
        %v751 = vmul.f32 %v743, 0.2
        %v752 = vmul.f32 %v744, 0.2
        %v753 = vmul.f32 %v745, 0.2
        %v754 = vsel %vm746, %v742, %v750
        %v755 = vsel %vm747, %v743, %v751
        %v756 = vsel %vm748, %v744, %v752
        %v757 = vsel %vm749, %v745, %v753
        %v758 = vadd.f32 %v389, %v754
        %v759 = vadd.f32 %v390, %v755
        %v760 = vadd.f32 %v391, %v756
        %v761 = vadd.f32 %v392, %v757
        %762 = vrot.lane.b32.xlu0 %v389, 34
        %v763 = vpop.permute.xlu0 %762
        %764 = vrot.lane.b32.xlu0 %v391, 34
        %v765 = vpop.permute.xlu0 %764
        %766 = vrot.lane.b32.xlu0 %v390, 34
        %v767 = vpop.permute.xlu0 %766
        %768 = vrot.lane.b32.xlu0 %v392, 34
        %v769 = vpop.permute.xlu0 %768
        %vm770 = vcmp.lt.s32.totalorder %v402, 34
        %v771 = vsel %vm770, %v763, %v767
        %v772 = vsel %vm770, %v765, %v769
        %v773 = vsel %vm770, %v767, %v763
        %v774 = vsel %vm770, %v769, %v765
        %s775 = scalar_lea.vmem %s5, 17
        %v776 = vld [vmem:[%s775] ss:$8 sm:$0x3]
        %v778 = vperm.slane %v776, 0
        %v779 = vperm.slane %v776, 1
        %v782 = vmul.f32 %v773, %v778
        %v783 = vmul.f32 %v771, %v779
        %v784 = vmul.f32 %v774, %v778
        %v785 = vmul.f32 %v772, %v779
        %786 = vset.pattern.permute.xlu0 9
        %787 = vperm.xlu0 %786, %v418
        %v788 = vpop.permute.xlu0 %787
        %790 = vset.pattern.permute.xlu0 9
        %791 = vperm.xlu0 %790, %v419
        %v792 = vpop.permute.xlu0 %791
        %v794 = vmul.f32 %v782, %v788
        %v795 = vmul.f32 %v783, %v788
        %v796 = vmul.f32 %v784, %v792
        %v797 = vmul.f32 %v785, %v792
        %798 = vrot.lane.b32.xlu0 %v389, 32
        %v799 = vpop.permute.xlu0 %798
        %800 = vrot.lane.b32.xlu0 %v391, 32
        %v801 = vpop.permute.xlu0 %800
        %802 = vrot.lane.b32.xlu0 %v390, 32
        %v803 = vpop.permute.xlu0 %802
        %804 = vrot.lane.b32.xlu0 %v392, 32
        %v805 = vpop.permute.xlu0 %804
        %vm806 = vcmp.lt.s32.totalorder %v402, 32
        %v807 = vsel %vm806, %v799, %v803
        %v808 = vsel %vm806, %v801, %v805
        %v809 = vsel %vm806, %v803, %v799
        %v810 = vsel %vm806, %v805, %v801
        %s811 = scalar_lea.vmem %s5, 18
        %v812 = vld [vmem:[%s811] ss:$8 sm:$0x3]
        %v814 = vperm.slane %v812, 0
        %v815 = vperm.slane %v812, 1
        %v818 = vmul.f32 %v809, %v814
        %v819 = vmul.f32 %v807, %v815
        %v820 = vmul.f32 %v810, %v814
        %v821 = vmul.f32 %v808, %v815
        %822 = vset.pattern.permute.xlu0 10
        %823 = vperm.xlu0 %822, %v418
        %v824 = vpop.permute.xlu0 %823
        %826 = vset.pattern.permute.xlu0 10
        %827 = vperm.xlu0 %826, %v419
        %v828 = vpop.permute.xlu0 %827
        %v830 = vmul.f32 %v818, %v824
        %v831 = vmul.f32 %v819, %v824
        %v832 = vmul.f32 %v820, %v828
        %v833 = vmul.f32 %v821, %v828
        %v834 = vadd.f32 %v794, %v830
        %v835 = vadd.f32 %v795, %v831
        %v836 = vadd.f32 %v796, %v832
        %v837 = vadd.f32 %v797, %v833
        %838 = vrot.lane.b32.xlu0 %v389, 30
        %v839 = vpop.permute.xlu0 %838
        %840 = vrot.lane.b32.xlu0 %v391, 30
        %v841 = vpop.permute.xlu0 %840
        %842 = vrot.lane.b32.xlu0 %v390, 30
        %v843 = vpop.permute.xlu0 %842
        %844 = vrot.lane.b32.xlu0 %v392, 30
        %v845 = vpop.permute.xlu0 %844
        %vm846 = vcmp.lt.s32.totalorder %v402, 30
        %v847 = vsel %vm846, %v839, %v843
        %v848 = vsel %vm846, %v841, %v845
        %v849 = vsel %vm846, %v843, %v839
        %v850 = vsel %vm846, %v845, %v841
        %s851 = scalar_lea.vmem %s5, 19
        %v852 = vld [vmem:[%s851] ss:$8 sm:$0x3]
        %v854 = vperm.slane %v852, 0
        %v855 = vperm.slane %v852, 1
        %v858 = vmul.f32 %v849, %v854
        %v859 = vmul.f32 %v847, %v855
        %v860 = vmul.f32 %v850, %v854
        %v861 = vmul.f32 %v848, %v855
        %862 = vset.pattern.permute.xlu0 11
        %863 = vperm.xlu0 %862, %v418
        %v864 = vpop.permute.xlu0 %863
        %866 = vset.pattern.permute.xlu0 11
        %867 = vperm.xlu0 %866, %v419
        %v868 = vpop.permute.xlu0 %867
        %v870 = vmul.f32 %v858, %v864
        %v871 = vmul.f32 %v859, %v864
        %v872 = vmul.f32 %v860, %v868
        %v873 = vmul.f32 %v861, %v868
        %v874 = vadd.f32 %v834, %v870
        %v875 = vadd.f32 %v835, %v871
        %v876 = vadd.f32 %v836, %v872
        %v877 = vadd.f32 %v837, %v873
        %878 = vrot.lane.b32.xlu0 %v389, 2
        %v879 = vpop.permute.xlu0 %878
        %880 = vrot.lane.b32.xlu0 %v391, 2
        %v881 = vpop.permute.xlu0 %880
        %882 = vrot.lane.b32.xlu0 %v390, 2
        %v883 = vpop.permute.xlu0 %882
        %884 = vrot.lane.b32.xlu0 %v392, 2
        %v885 = vpop.permute.xlu0 %884
        %vm886 = vcmp.lt.s32.totalorder %v402, 2
        %v887 = vsel %vm886, %v879, %v883
        %v888 = vsel %vm886, %v881, %v885
        %v889 = vsel %vm886, %v883, %v879
        %v890 = vsel %vm886, %v885, %v881
        %s891 = scalar_lea.vmem %s5, 20
        %v892 = vld [vmem:[%s891] ss:$8 sm:$0x3]
        %v894 = vperm.slane %v892, 0
        %v895 = vperm.slane %v892, 1
        %v898 = vmul.f32 %v889, %v894
        %v899 = vmul.f32 %v887, %v895
        %v900 = vmul.f32 %v890, %v894
        %v901 = vmul.f32 %v888, %v895
        %902 = vset.pattern.permute.xlu0 12
        %903 = vperm.xlu0 %902, %v418
        %v904 = vpop.permute.xlu0 %903
        %906 = vset.pattern.permute.xlu0 12
        %907 = vperm.xlu0 %906, %v419
        %v908 = vpop.permute.xlu0 %907
        %v910 = vmul.f32 %v898, %v904
        %v911 = vmul.f32 %v899, %v904
        %v912 = vmul.f32 %v900, %v908
        %v913 = vmul.f32 %v901, %v908
        %v914 = vadd.f32 %v874, %v910
        %v915 = vadd.f32 %v875, %v911
        %v916 = vadd.f32 %v876, %v912
        %v917 = vadd.f32 %v877, %v913
        %918 = vset.pattern.permute.xlu0 13
        %919 = vperm.xlu0 %918, %v418
        %v920 = vpop.permute.xlu0 %919
        %922 = vset.pattern.permute.xlu0 13
        %923 = vperm.xlu0 %922, %v419
        %v924 = vpop.permute.xlu0 %923
        %v926 = vmul.f32 %v389, %v920
        %v927 = vmul.f32 %v390, %v920
        %v928 = vmul.f32 %v391, %v924
        %v929 = vmul.f32 %v392, %v924
        %v930 = vadd.f32 %v914, %v926
        %v931 = vadd.f32 %v915, %v927
        %v932 = vadd.f32 %v916, %v928
        %v933 = vadd.f32 %v917, %v929
        %934 = vrot.lane.b32.xlu0 %v389, 126
        %v935 = vpop.permute.xlu0 %934
        %936 = vrot.lane.b32.xlu0 %v391, 126
        %v937 = vpop.permute.xlu0 %936
        %938 = vrot.lane.b32.xlu0 %v390, 126
        %v939 = vpop.permute.xlu0 %938
        %940 = vrot.lane.b32.xlu0 %v392, 126
        %v941 = vpop.permute.xlu0 %940
        %vm942 = vcmp.lt.s32.totalorder %v402, 126
        %v943 = vsel %vm942, %v935, %v939
        %v944 = vsel %vm942, %v937, %v941
        %v945 = vsel %vm942, %v939, %v935
        %v946 = vsel %vm942, %v941, %v937
        %s947 = scalar_lea.vmem %s5, 22
        %v948 = vld [vmem:[%s947] ss:$8 sm:$0x3]
        %v950 = vperm.slane %v948, 0
        %v951 = vperm.slane %v948, 1
        %v954 = vmul.f32 %v943, %v950
        %v955 = vmul.f32 %v945, %v951
        %v956 = vmul.f32 %v944, %v950
        %v957 = vmul.f32 %v946, %v951
        %958 = vset.pattern.permute.xlu0 14
        %959 = vperm.xlu0 %958, %v418
        %v960 = vpop.permute.xlu0 %959
        %962 = vset.pattern.permute.xlu0 14
        %963 = vperm.xlu0 %962, %v419
        %v964 = vpop.permute.xlu0 %963
        %v966 = vmul.f32 %v954, %v960
        %v967 = vmul.f32 %v955, %v960
        %v968 = vmul.f32 %v956, %v964
        %v969 = vmul.f32 %v957, %v964
        %v970 = vadd.f32 %v930, %v966
        %v971 = vadd.f32 %v931, %v967
        %v972 = vadd.f32 %v932, %v968
        %v973 = vadd.f32 %v933, %v969
        %974 = vrot.lane.b32.xlu0 %v389, 98
        %v975 = vpop.permute.xlu0 %974
        %976 = vrot.lane.b32.xlu0 %v391, 98
        %v977 = vpop.permute.xlu0 %976
        %978 = vrot.lane.b32.xlu0 %v390, 98
        %v979 = vpop.permute.xlu0 %978
        %980 = vrot.lane.b32.xlu0 %v392, 98
        %v981 = vpop.permute.xlu0 %980
        %vm982 = vcmp.lt.s32.totalorder %v402, 98
        %v983 = vsel %vm982, %v975, %v979
        %v984 = vsel %vm982, %v977, %v981
        %v985 = vsel %vm982, %v979, %v975
        %v986 = vsel %vm982, %v981, %v977
        %s987 = scalar_lea.vmem %s5, 23
        %v988 = vld [vmem:[%s987] ss:$8 sm:$0x3]
        %v990 = vperm.slane %v988, 0
        %v991 = vperm.slane %v988, 1
        %v994 = vmul.f32 %v983, %v990
        %v995 = vmul.f32 %v985, %v991
        %v996 = vmul.f32 %v984, %v990
        %v997 = vmul.f32 %v986, %v991
        %998 = vset.pattern.permute.xlu0 15
        %999 = vperm.xlu0 %998, %v418
        %v1000 = vpop.permute.xlu0 %999
        %1002 = vset.pattern.permute.xlu0 15
        %1003 = vperm.xlu0 %1002, %v419
        %v1004 = vpop.permute.xlu0 %1003
        %v1006 = vmul.f32 %v994, %v1000
        %v1007 = vmul.f32 %v995, %v1000
        %v1008 = vmul.f32 %v996, %v1004
        %v1009 = vmul.f32 %v997, %v1004
        %v1010 = vadd.f32 %v970, %v1006
        %v1011 = vadd.f32 %v971, %v1007
        %v1012 = vadd.f32 %v972, %v1008
        %v1013 = vadd.f32 %v973, %v1009
        %1014 = vrot.lane.b32.xlu0 %v389, 96
        %v1015 = vpop.permute.xlu0 %1014
        %1016 = vrot.lane.b32.xlu0 %v391, 96
        %v1017 = vpop.permute.xlu0 %1016
        %1018 = vrot.lane.b32.xlu0 %v390, 96
        %v1019 = vpop.permute.xlu0 %1018
        %1020 = vrot.lane.b32.xlu0 %v392, 96
        %v1021 = vpop.permute.xlu0 %1020
        %vm1022 = vcmp.lt.s32.totalorder %v402, 96
        %v1023 = vsel %vm1022, %v1015, %v1019
        %v1024 = vsel %vm1022, %v1017, %v1021
        %v1025 = vsel %vm1022, %v1019, %v1015
        %v1026 = vsel %vm1022, %v1021, %v1017
        %s1027 = scalar_lea.vmem %s5, 32
        %v1028 = vld [vmem:[%s1027] ss:$8 sm:$0x3]
        %v1030 = vperm.slane %v1028, 0
        %v1031 = vperm.slane %v1028, 1
        %v1034 = vmul.f32 %v1023, %v1030
        %v1035 = vmul.f32 %v1025, %v1031
        %v1036 = vmul.f32 %v1024, %v1030
        %v1037 = vmul.f32 %v1026, %v1031
        %1038 = vset.pattern.permute.xlu0 16
        %1039 = vperm.xlu0 %1038, %v418
        %v1040 = vpop.permute.xlu0 %1039
        %1042 = vset.pattern.permute.xlu0 16
        %1043 = vperm.xlu0 %1042, %v419
        %v1044 = vpop.permute.xlu0 %1043
        %v1046 = vmul.f32 %v1034, %v1040
        %v1047 = vmul.f32 %v1035, %v1040
        %v1048 = vmul.f32 %v1036, %v1044
        %v1049 = vmul.f32 %v1037, %v1044
        %v1050 = vadd.f32 %v1010, %v1046
        %v1051 = vadd.f32 %v1011, %v1047
        %v1052 = vadd.f32 %v1012, %v1048
        %v1053 = vadd.f32 %v1013, %v1049
        %1054 = vrot.lane.b32.xlu0 %v389, 94
        %v1055 = vpop.permute.xlu0 %1054
        %1056 = vrot.lane.b32.xlu0 %v391, 94
        %v1057 = vpop.permute.xlu0 %1056
        %1058 = vrot.lane.b32.xlu0 %v390, 94
        %v1059 = vpop.permute.xlu0 %1058
        %1060 = vrot.lane.b32.xlu0 %v392, 94
        %v1061 = vpop.permute.xlu0 %1060
        %vm1062 = vcmp.lt.s32.totalorder %v402, 94
        %v1063 = vsel %vm1062, %v1055, %v1059
        %v1064 = vsel %vm1062, %v1057, %v1061
        %v1065 = vsel %vm1062, %v1059, %v1055
        %v1066 = vsel %vm1062, %v1061, %v1057
        %s1067 = scalar_lea.vmem %s5, 33
        %v1068 = vld [vmem:[%s1067] ss:$8 sm:$0x3]
        %v1070 = vperm.slane %v1068, 0
        %v1071 = vperm.slane %v1068, 1
        %v1074 = vmul.f32 %v1063, %v1070
        %v1075 = vmul.f32 %v1065, %v1071
        %v1076 = vmul.f32 %v1064, %v1070
        %v1077 = vmul.f32 %v1066, %v1071
        %1078 = vset.pattern.permute.xlu0 17
        %1079 = vperm.xlu0 %1078, %v418
        %v1080 = vpop.permute.xlu0 %1079
        %1082 = vset.pattern.permute.xlu0 17
        %1083 = vperm.xlu0 %1082, %v419
        %v1084 = vpop.permute.xlu0 %1083
        %v1086 = vmul.f32 %v1074, %v1080
        %v1087 = vmul.f32 %v1075, %v1080
        %v1088 = vmul.f32 %v1076, %v1084
        %v1089 = vmul.f32 %v1077, %v1084
        %v1090 = vadd.f32 %v1050, %v1086
        %v1091 = vadd.f32 %v1051, %v1087
        %v1092 = vadd.f32 %v1052, %v1088
        %v1093 = vadd.f32 %v1053, %v1089
        %1094 = vset.pattern.permute.xlu0 1
        %1095 = vperm.xlu0 %1094, %v730
        %v1096 = vpop.permute.xlu0 %1095
        %1098 = vset.pattern.permute.xlu0 1
        %1099 = vperm.xlu0 %1098, %v731
        %v1100 = vpop.permute.xlu0 %1099
        %v1102 = vadd.f32 %v1090, %v1096
        %v1103 = vadd.f32 %v1091, %v1096
        %v1104 = vadd.f32 %v1092, %v1100
        %v1105 = vadd.f32 %v1093, %v1100
        %vm1106 = vcmp.gt.f32.partialorder %v1102, 0.0
        %vm1107 = vcmp.gt.f32.partialorder %v1103, 0.0
        %vm1108 = vcmp.gt.f32.partialorder %v1104, 0.0
        %vm1109 = vcmp.gt.f32.partialorder %v1105, 0.0
        %v1110 = vmul.f32 %v1102, 0.2
        %v1111 = vmul.f32 %v1103, 0.2
        %v1112 = vmul.f32 %v1104, 0.2
        %v1113 = vmul.f32 %v1105, 0.2
        %v1114 = vsel %vm1106, %v1102, %v1110
        %v1115 = vsel %vm1107, %v1103, %v1111
        %v1116 = vsel %vm1108, %v1104, %v1112
        %v1117 = vsel %vm1109, %v1105, %v1113
        %v1118 = vadd.f32 %v758, %v1114
        %v1119 = vadd.f32 %v759, %v1115
        %v1120 = vadd.f32 %v760, %v1116
        %v1121 = vadd.f32 %v761, %v1117
        %1122 = vrot.lane.b32.xlu0 %v389, 51
        %v1123 = vpop.permute.xlu0 %1122
        %1124 = vrot.lane.b32.xlu0 %v391, 51
        %v1125 = vpop.permute.xlu0 %1124
        %1126 = vrot.lane.b32.xlu0 %v390, 51
        %v1127 = vpop.permute.xlu0 %1126
        %1128 = vrot.lane.b32.xlu0 %v392, 51
        %v1129 = vpop.permute.xlu0 %1128
        %vm1130 = vcmp.lt.s32.totalorder %v402, 51
        %v1131 = vsel %vm1130, %v1123, %v1127
        %v1132 = vsel %vm1130, %v1125, %v1129
        %v1133 = vsel %vm1130, %v1127, %v1123
        %v1134 = vsel %vm1130, %v1129, %v1125
        %s1135 = scalar_lea.vmem %s5, 34
        %v1136 = vld [vmem:[%s1135] ss:$8 sm:$0x3]
        %v1138 = vperm.slane %v1136, 0
        %v1139 = vperm.slane %v1136, 1
        %v1142 = vmul.f32 %v1133, %v1138
        %v1143 = vmul.f32 %v1131, %v1139
        %v1144 = vmul.f32 %v1134, %v1138
        %v1145 = vmul.f32 %v1132, %v1139
        %1146 = vset.pattern.permute.xlu0 18
        %1147 = vperm.xlu0 %1146, %v418
        %v1148 = vpop.permute.xlu0 %1147
        %1150 = vset.pattern.permute.xlu0 18
        %1151 = vperm.xlu0 %1150, %v419
        %v1152 = vpop.permute.xlu0 %1151
        %v1154 = vmul.f32 %v1142, %v1148
        %v1155 = vmul.f32 %v1143, %v1148
        %v1156 = vmul.f32 %v1144, %v1152
        %v1157 = vmul.f32 %v1145, %v1152
        %1158 = vrot.lane.b32.xlu0 %v389, 48
        %v1159 = vpop.permute.xlu0 %1158
        %1160 = vrot.lane.b32.xlu0 %v391, 48
        %v1161 = vpop.permute.xlu0 %1160
        %1162 = vrot.lane.b32.xlu0 %v390, 48
        %v1163 = vpop.permute.xlu0 %1162
        %1164 = vrot.lane.b32.xlu0 %v392, 48
        %v1165 = vpop.permute.xlu0 %1164
        %vm1166 = vcmp.lt.s32.totalorder %v402, 48
        %v1167 = vsel %vm1166, %v1159, %v1163
        %v1168 = vsel %vm1166, %v1161, %v1165
        %v1169 = vsel %vm1166, %v1163, %v1159
        %v1170 = vsel %vm1166, %v1165, %v1161
        %s1171 = scalar_lea.vmem %s5, 35
        %v1172 = vld [vmem:[%s1171] ss:$8 sm:$0x3]
        %v1174 = vperm.slane %v1172, 0
        %v1175 = vperm.slane %v1172, 1
        %v1178 = vmul.f32 %v1169, %v1174
        %v1179 = vmul.f32 %v1167, %v1175
        %v1180 = vmul.f32 %v1170, %v1174
        %v1181 = vmul.f32 %v1168, %v1175
        %1182 = vset.pattern.permute.xlu0 19
        %1183 = vperm.xlu0 %1182, %v418
        %v1184 = vpop.permute.xlu0 %1183
        %1186 = vset.pattern.permute.xlu0 19
        %1187 = vperm.xlu0 %1186, %v419
        %v1188 = vpop.permute.xlu0 %1187
        %v1190 = vmul.f32 %v1178, %v1184
        %v1191 = vmul.f32 %v1179, %v1184
        %v1192 = vmul.f32 %v1180, %v1188
        %v1193 = vmul.f32 %v1181, %v1188
        %v1194 = vadd.f32 %v1154, %v1190
        %v1195 = vadd.f32 %v1155, %v1191
        %v1196 = vadd.f32 %v1156, %v1192
        %v1197 = vadd.f32 %v1157, %v1193
        %1198 = vrot.lane.b32.xlu0 %v389, 45
        %v1199 = vpop.permute.xlu0 %1198
        %1200 = vrot.lane.b32.xlu0 %v391, 45
        %v1201 = vpop.permute.xlu0 %1200
        %1202 = vrot.lane.b32.xlu0 %v390, 45
        %v1203 = vpop.permute.xlu0 %1202
        %1204 = vrot.lane.b32.xlu0 %v392, 45
        %v1205 = vpop.permute.xlu0 %1204
        %vm1206 = vcmp.lt.s32.totalorder %v402, 45
        %v1207 = vsel %vm1206, %v1199, %v1203
        %v1208 = vsel %vm1206, %v1201, %v1205
        %v1209 = vsel %vm1206, %v1203, %v1199
        %v1210 = vsel %vm1206, %v1205, %v1201
        %s1211 = scalar_lea.vmem %s5, 36
        %v1212 = vld [vmem:[%s1211] ss:$8 sm:$0x3]
        %v1214 = vperm.slane %v1212, 0
        %v1215 = vperm.slane %v1212, 1
        %v1218 = vmul.f32 %v1209, %v1214
        %v1219 = vmul.f32 %v1207, %v1215
        %v1220 = vmul.f32 %v1210, %v1214
        %v1221 = vmul.f32 %v1208, %v1215
        %1222 = vset.pattern.permute.xlu0 20
        %1223 = vperm.xlu0 %1222, %v418
        %v1224 = vpop.permute.xlu0 %1223
        %1226 = vset.pattern.permute.xlu0 20
        %1227 = vperm.xlu0 %1226, %v419
        %v1228 = vpop.permute.xlu0 %1227
        %v1230 = vmul.f32 %v1218, %v1224
        %v1231 = vmul.f32 %v1219, %v1224
        %v1232 = vmul.f32 %v1220, %v1228
        %v1233 = vmul.f32 %v1221, %v1228
        %v1234 = vadd.f32 %v1194, %v1230
        %v1235 = vadd.f32 %v1195, %v1231
        %v1236 = vadd.f32 %v1196, %v1232
        %v1237 = vadd.f32 %v1197, %v1233
        %1238 = vrot.lane.b32.xlu0 %v389, 3
        %v1239 = vpop.permute.xlu0 %1238
        %1240 = vrot.lane.b32.xlu0 %v391, 3
        %v1241 = vpop.permute.xlu0 %1240
        %1242 = vrot.lane.b32.xlu0 %v390, 3
        %v1243 = vpop.permute.xlu0 %1242
        %1244 = vrot.lane.b32.xlu0 %v392, 3
        %v1245 = vpop.permute.xlu0 %1244
        %vm1246 = vcmp.lt.s32.totalorder %v402, 3
        %v1247 = vsel %vm1246, %v1239, %v1243
        %v1248 = vsel %vm1246, %v1241, %v1245
        %v1249 = vsel %vm1246, %v1243, %v1239
        %v1250 = vsel %vm1246, %v1245, %v1241
        %s1251 = scalar_lea.vmem %s5, 37
        %v1252 = vld [vmem:[%s1251] ss:$8 sm:$0x3]
        %v1254 = vperm.slane %v1252, 0
        %v1255 = vperm.slane %v1252, 1
        %v1258 = vmul.f32 %v1249, %v1254
        %v1259 = vmul.f32 %v1247, %v1255
        %v1260 = vmul.f32 %v1250, %v1254
        %v1261 = vmul.f32 %v1248, %v1255
        %1262 = vset.pattern.permute.xlu0 21
        %1263 = vperm.xlu0 %1262, %v418
        %v1264 = vpop.permute.xlu0 %1263
        %1266 = vset.pattern.permute.xlu0 21
        %1267 = vperm.xlu0 %1266, %v419
        %v1268 = vpop.permute.xlu0 %1267
        %v1270 = vmul.f32 %v1258, %v1264
        %v1271 = vmul.f32 %v1259, %v1264
        %v1272 = vmul.f32 %v1260, %v1268
        %v1273 = vmul.f32 %v1261, %v1268
        %v1274 = vadd.f32 %v1234, %v1270
        %v1275 = vadd.f32 %v1235, %v1271
        %v1276 = vadd.f32 %v1236, %v1272
        %v1277 = vadd.f32 %v1237, %v1273
        %1278 = vset.pattern.permute.xlu0 22
        %1279 = vperm.xlu0 %1278, %v418
        %v1280 = vpop.permute.xlu0 %1279
        %1282 = vset.pattern.permute.xlu0 22
        %1283 = vperm.xlu0 %1282, %v419
        %v1284 = vpop.permute.xlu0 %1283
        %v1286 = vmul.f32 %v389, %v1280
        %v1287 = vmul.f32 %v390, %v1280
        %v1288 = vmul.f32 %v391, %v1284
        %v1289 = vmul.f32 %v392, %v1284
        %v1290 = vadd.f32 %v1274, %v1286
        %v1291 = vadd.f32 %v1275, %v1287
        %v1292 = vadd.f32 %v1276, %v1288
        %v1293 = vadd.f32 %v1277, %v1289
        %1294 = vrot.lane.b32.xlu0 %v389, 125
        %v1295 = vpop.permute.xlu0 %1294
        %1296 = vrot.lane.b32.xlu0 %v391, 125
        %v1297 = vpop.permute.xlu0 %1296
        %1298 = vrot.lane.b32.xlu0 %v390, 125
        %v1299 = vpop.permute.xlu0 %1298
        %1300 = vrot.lane.b32.xlu0 %v392, 125
        %v1301 = vpop.permute.xlu0 %1300
        %vm1302 = vcmp.lt.s32.totalorder %v402, 125
        %v1303 = vsel %vm1302, %v1295, %v1299
        %v1304 = vsel %vm1302, %v1297, %v1301
        %v1305 = vsel %vm1302, %v1299, %v1295
        %v1306 = vsel %vm1302, %v1301, %v1297
        %s1307 = scalar_lea.vmem %s5, 39
        %v1308 = vld [vmem:[%s1307] ss:$8 sm:$0x3]
        %v1310 = vperm.slane %v1308, 0
        %v1311 = vperm.slane %v1308, 1
        %v1314 = vmul.f32 %v1303, %v1310
        %v1315 = vmul.f32 %v1305, %v1311
        %v1316 = vmul.f32 %v1304, %v1310
        %v1317 = vmul.f32 %v1306, %v1311
        %1318 = vset.pattern.permute.xlu0 23
        %1319 = vperm.xlu0 %1318, %v418
        %v1320 = vpop.permute.xlu0 %1319
        %1322 = vset.pattern.permute.xlu0 23
        %1323 = vperm.xlu0 %1322, %v419
        %v1324 = vpop.permute.xlu0 %1323
        %v1326 = vmul.f32 %v1314, %v1320
        %v1327 = vmul.f32 %v1315, %v1320
        %v1328 = vmul.f32 %v1316, %v1324
        %v1329 = vmul.f32 %v1317, %v1324
        %v1330 = vadd.f32 %v1290, %v1326
        %v1331 = vadd.f32 %v1291, %v1327
        %v1332 = vadd.f32 %v1292, %v1328
        %v1333 = vadd.f32 %v1293, %v1329
        %1334 = vrot.lane.b32.xlu0 %v389, 83
        %v1335 = vpop.permute.xlu0 %1334
        %1336 = vrot.lane.b32.xlu0 %v391, 83
        %v1337 = vpop.permute.xlu0 %1336
        %1338 = vrot.lane.b32.xlu0 %v390, 83
        %v1339 = vpop.permute.xlu0 %1338
        %1340 = vrot.lane.b32.xlu0 %v392, 83
        %v1341 = vpop.permute.xlu0 %1340
        %vm1342 = vcmp.lt.s32.totalorder %v402, 83
        %v1343 = vsel %vm1342, %v1335, %v1339
        %v1344 = vsel %vm1342, %v1337, %v1341
        %v1345 = vsel %vm1342, %v1339, %v1335
        %v1346 = vsel %vm1342, %v1341, %v1337
        %s1347 = scalar_lea.vmem %s5, 48
        %v1348 = vld [vmem:[%s1347] ss:$8 sm:$0x3]
        %v1350 = vperm.slane %v1348, 0
        %v1351 = vperm.slane %v1348, 1
        %v1354 = vmul.f32 %v1343, %v1350
        %v1355 = vmul.f32 %v1345, %v1351
        %v1356 = vmul.f32 %v1344, %v1350
        %v1357 = vmul.f32 %v1346, %v1351
        %1358 = vset.pattern.permute.xlu0 24
        %1359 = vperm.xlu0 %1358, %v418
        %v1360 = vpop.permute.xlu0 %1359
        %1362 = vset.pattern.permute.xlu0 24
        %1363 = vperm.xlu0 %1362, %v419
        %v1364 = vpop.permute.xlu0 %1363
        %v1366 = vmul.f32 %v1354, %v1360
        %v1367 = vmul.f32 %v1355, %v1360
        %v1368 = vmul.f32 %v1356, %v1364
        %v1369 = vmul.f32 %v1357, %v1364
        %v1370 = vadd.f32 %v1330, %v1366
        %v1371 = vadd.f32 %v1331, %v1367
        %v1372 = vadd.f32 %v1332, %v1368
        %v1373 = vadd.f32 %v1333, %v1369
        %1374 = vrot.lane.b32.xlu0 %v389, 80
        %v1375 = vpop.permute.xlu0 %1374
        %1376 = vrot.lane.b32.xlu0 %v391, 80
        %v1377 = vpop.permute.xlu0 %1376
        %1378 = vrot.lane.b32.xlu0 %v390, 80
        %v1379 = vpop.permute.xlu0 %1378
        %1380 = vrot.lane.b32.xlu0 %v392, 80
        %v1381 = vpop.permute.xlu0 %1380
        %vm1382 = vcmp.lt.s32.totalorder %v402, 80
        %v1383 = vsel %vm1382, %v1375, %v1379
        %v1384 = vsel %vm1382, %v1377, %v1381
        %v1385 = vsel %vm1382, %v1379, %v1375
        %v1386 = vsel %vm1382, %v1381, %v1377
        %s1387 = scalar_lea.vmem %s5, 49
        %v1388 = vld [vmem:[%s1387] ss:$8 sm:$0x3]
        %v1390 = vperm.slane %v1388, 0
        %v1391 = vperm.slane %v1388, 1
        %v1394 = vmul.f32 %v1383, %v1390
        %v1395 = vmul.f32 %v1385, %v1391
        %v1396 = vmul.f32 %v1384, %v1390
        %v1397 = vmul.f32 %v1386, %v1391
        %1398 = vset.pattern.permute.xlu0 25
        %1399 = vperm.xlu0 %1398, %v418
        %v1400 = vpop.permute.xlu0 %1399
        %1402 = vset.pattern.permute.xlu0 25
        %1403 = vperm.xlu0 %1402, %v419
        %v1404 = vpop.permute.xlu0 %1403
        %v1406 = vmul.f32 %v1394, %v1400
        %v1407 = vmul.f32 %v1395, %v1400
        %v1408 = vmul.f32 %v1396, %v1404
        %v1409 = vmul.f32 %v1397, %v1404
        %v1410 = vadd.f32 %v1370, %v1406
        %v1411 = vadd.f32 %v1371, %v1407
        %v1412 = vadd.f32 %v1372, %v1408
        %v1413 = vadd.f32 %v1373, %v1409
        %1414 = vrot.lane.b32.xlu0 %v389, 77
        %v1415 = vpop.permute.xlu0 %1414
        %1416 = vrot.lane.b32.xlu0 %v391, 77
        %v1417 = vpop.permute.xlu0 %1416
        %1418 = vrot.lane.b32.xlu0 %v390, 77
        %v1419 = vpop.permute.xlu0 %1418
        %1420 = vrot.lane.b32.xlu0 %v392, 77
        %v1421 = vpop.permute.xlu0 %1420
        %vm1422 = vcmp.lt.s32.totalorder %v402, 77
        %v1423 = vsel %vm1422, %v1415, %v1419
        %v1424 = vsel %vm1422, %v1417, %v1421
        %v1425 = vsel %vm1422, %v1419, %v1415
        %v1426 = vsel %vm1422, %v1421, %v1417
        %s1427 = scalar_lea.vmem %s5, 50
        %v1428 = vld [vmem:[%s1427] ss:$8 sm:$0x3]
        %v1430 = vperm.slane %v1428, 0
        %v1431 = vperm.slane %v1428, 1
        %v1434 = vmul.f32 %v1423, %v1430
        %v1435 = vmul.f32 %v1425, %v1431
        %v1436 = vmul.f32 %v1424, %v1430
        %v1437 = vmul.f32 %v1426, %v1431
        %1438 = vset.pattern.permute.xlu0 26
        %1439 = vperm.xlu0 %1438, %v418
        %v1440 = vpop.permute.xlu0 %1439
        %1442 = vset.pattern.permute.xlu0 26
        %1443 = vperm.xlu0 %1442, %v419
        %v1444 = vpop.permute.xlu0 %1443
        %v1446 = vmul.f32 %v1434, %v1440
        %v1447 = vmul.f32 %v1435, %v1440
        %v1448 = vmul.f32 %v1436, %v1444
        %v1449 = vmul.f32 %v1437, %v1444
        %v1450 = vadd.f32 %v1410, %v1446
        %v1451 = vadd.f32 %v1411, %v1447
        %v1452 = vadd.f32 %v1412, %v1448
        %v1453 = vadd.f32 %v1413, %v1449
        %1454 = vset.pattern.permute.xlu0 2
        %1455 = vperm.xlu0 %1454, %v730
        %v1456 = vpop.permute.xlu0 %1455
        %1458 = vset.pattern.permute.xlu0 2
        %1459 = vperm.xlu0 %1458, %v731
        %v1460 = vpop.permute.xlu0 %1459
        %v1462 = vadd.f32 %v1450, %v1456
        %v1463 = vadd.f32 %v1451, %v1456
        %v1464 = vadd.f32 %v1452, %v1460
        %v1465 = vadd.f32 %v1453, %v1460
        %vm1466 = vcmp.gt.f32.partialorder %v1462, 0.0
        %vm1467 = vcmp.gt.f32.partialorder %v1463, 0.0
        %vm1468 = vcmp.gt.f32.partialorder %v1464, 0.0
        %vm1469 = vcmp.gt.f32.partialorder %v1465, 0.0
        %v1470 = vmul.f32 %v1462, 0.2
        %v1471 = vmul.f32 %v1463, 0.2
        %v1472 = vmul.f32 %v1464, 0.2
        %v1473 = vmul.f32 %v1465, 0.2
        %v1474 = vsel %vm1466, %v1462, %v1470
        %v1475 = vsel %vm1467, %v1463, %v1471
        %v1476 = vsel %vm1468, %v1464, %v1472
        %v1477 = vsel %vm1469, %v1465, %v1473
        %v1478 = vadd.f32 %v1118, %v1474
        %v1479 = vadd.f32 %v1119, %v1475
        %v1480 = vadd.f32 %v1120, %v1476
        %v1481 = vadd.f32 %v1121, %v1477
        %v1482 = vld [vmem:[%s6] sm:$0xff]
        %v1483 = vld [vmem:[%s6 + $0x8] sm:$0xff]
        %v1484 = vld [vmem:[%s6 + $0x10] sm:$0xff]
        %v1485 = vld [vmem:[%s6 + $0x18] sm:$0xff]
        %v1486 = vld [vmem:[%s7] sm:$0xff]
        %v1487 = vld [vmem:[%s7 + $0x8] sm:$0xff]
        %v1488 = vld [vmem:[%s7 + $0x10] sm:$0xff]
        %v1489 = vld [vmem:[%s7 + $0x18] sm:$0xff]
        %1491 = vset.pattern.permute.xlu0 0
        %1492 = vperm.xlu0 %1491, %v1486
        %v1493 = vpop.permute.xlu0 %1492
        %1496 = vset.pattern.permute.xlu0 0
        %1497 = vperm.xlu0 %1496, %v1487
        %v1498 = vpop.permute.xlu0 %1497
        %1501 = vset.pattern.permute.xlu0 0
        %1502 = vperm.xlu0 %1501, %v1488
        %v1503 = vpop.permute.xlu0 %1502
        %1506 = vset.pattern.permute.xlu0 0
        %1507 = vperm.xlu0 %1506, %v1489
        %v1508 = vpop.permute.xlu0 %1507
        %vm1510 = vcmask 130048
        %v1512 = vsel %vm1510, %v1482, 0
        %v1515 = vsel %vm1510, %v1483, 0
        %v1518 = vsel %vm1510, %v1484, 0
        %v1521 = vsel %vm1510, %v1485, 0
        %1523 = vmatpush.msra.mxu0 0.0
        %1524 = vmatpush.msra.mxu0 0.0
        %1525 = vmatpush.msra.mxu0 0.0
        %1526 = vmatpush.msra.mxu0 0.0
        %1527 = vmatpush.msra.mxu0 0.0
        %1528 = vmatpush.msra.mxu0 0.0
        %1529 = vmatpush.msra.mxu0 0.0
        %1530 = vmatpush.msra.mxu0 0.0
        %1531 = vmatpush.msra.mxu0 0.0
        %1532 = vmatpush.msra.mxu0 0.0
        %1533 = vmatpush.msra.mxu0 0.0
        %1534 = vmatpush.msra.mxu0 0.0
        %1535 = vmatpush.msra.mxu0 0.0
        %1536 = vmatpush.msra.mxu0 0.0
        %1537 = vmatpush.msra.mxu0 %v1480
        %1538 = vmatpush.msra.mxu0 %v1478
        %1539 = vmatmul.f32.gmra.mxu0 %v1512
        %v1540 = vpop.f32.mrf.mxu0
        %v1541 = vadd.f32 %v1493, %v1540
        %1542 = vmatmul.f32.gmra.mxu0 %v1515
        %v1543 = vpop.f32.mrf.mxu0
        %v1544 = vadd.f32 %v1498, %v1543
        %1545 = vmatmul.f32.gmra.mxu0 %v1518
        %v1546 = vpop.f32.mrf.mxu0
        %v1547 = vadd.f32 %v1503, %v1546
        %1548 = vmatmul.f32.gmra.mxu0 %v1521
        %v1549 = vpop.f32.mrf.mxu0
        %v1550 = vadd.f32 %v1508, %v1549
        %1551 = vdwg.mxu0
        %1552 = vmatpush.msra.mxu0 0.0
        %1553 = vmatpush.msra.mxu0 0.0
        %1554 = vmatpush.msra.mxu0 0.0
        %1555 = vmatpush.msra.mxu0 0.0
        %1556 = vmatpush.msra.mxu0 0.0
        %1557 = vmatpush.msra.mxu0 0.0
        %1558 = vmatpush.msra.mxu0 0.0
        %1559 = vmatpush.msra.mxu0 0.0
        %1560 = vmatpush.msra.mxu0 0.0
        %1561 = vmatpush.msra.mxu0 0.0
        %1562 = vmatpush.msra.mxu0 0.0
        %1563 = vmatpush.msra.mxu0 0.0
        %1564 = vmatpush.msra.mxu0 0.0
        %1565 = vmatpush.msra.mxu0 0.0
        %1566 = vmatpush.msra.mxu0 %v1481
        %1567 = vmatpush.msra.mxu0 %v1479
        %1568 = vmatmul.f32.gmra.mxu0 %v1512
        %v1569 = vpop.f32.mrf.mxu0
        %v1570 = vadd.f32 %v1493, %v1569
        %1571 = vmatmul.f32.gmra.mxu0 %v1515
        %v1572 = vpop.f32.mrf.mxu0
        %v1573 = vadd.f32 %v1498, %v1572
        %1574 = vmatmul.f32.gmra.mxu0 %v1518
        %v1575 = vpop.f32.mrf.mxu0
        %v1576 = vadd.f32 %v1503, %v1575
        %1577 = vmatmul.f32.gmra.mxu0 %v1521
        %v1578 = vpop.f32.mrf.mxu0
        %v1579 = vadd.f32 %v1508, %v1578
        %1580 = vdwg.mxu0
        %vm1581 = vcmp.gt.f32.partialorder %v1541, 0.0
        %vm1582 = vcmp.gt.f32.partialorder %v1570, 0.0
        %vm1583 = vcmp.gt.f32.partialorder %v1544, 0.0
        %vm1584 = vcmp.gt.f32.partialorder %v1573, 0.0
        %vm1585 = vcmp.gt.f32.partialorder %v1547, 0.0
        %vm1586 = vcmp.gt.f32.partialorder %v1576, 0.0
        %vm1587 = vcmp.gt.f32.partialorder %v1550, 0.0
        %vm1588 = vcmp.gt.f32.partialorder %v1579, 0.0
        %v1589 = vmul.f32 %v1541, 0.2
        %v1590 = vmul.f32 %v1570, 0.2
        %v1591 = vmul.f32 %v1544, 0.2
        %v1592 = vmul.f32 %v1573, 0.2
        %v1593 = vmul.f32 %v1547, 0.2
        %v1594 = vmul.f32 %v1576, 0.2
        %v1595 = vmul.f32 %v1550, 0.2
        %v1596 = vmul.f32 %v1579, 0.2
        %v1597 = vsel %vm1581, %v1541, %v1589
        %v1598 = vsel %vm1582, %v1570, %v1590
        %v1599 = vsel %vm1583, %v1544, %v1591
        %v1600 = vsel %vm1584, %v1573, %v1592
        %v1601 = vsel %vm1585, %v1547, %v1593
        %v1602 = vsel %vm1586, %v1576, %v1594
        %v1603 = vsel %vm1587, %v1550, %v1595
        %v1604 = vsel %vm1588, %v1579, %v1596
        %1605 = vst [vmem:[%s298] sm:$0xff] %v1597
        %1606 = vst [vmem:[%s298 + $0x8] sm:$0xff] %v1598
        %1607 = vst [vmem:[%s298 + $0x10] sm:$0xff] %v1599
        %1608 = vst [vmem:[%s298 + $0x18] sm:$0xff] %v1600
        %1609 = vst [vmem:[%s298 + $0x20] sm:$0xff] %v1601
        %1610 = vst [vmem:[%s298 + $0x28] sm:$0xff] %v1602
        %1611 = vst [vmem:[%s298 + $0x30] sm:$0xff] %v1603
        %1612 = vst [vmem:[%s298 + $0x38] sm:$0xff] %v1604
        %s1613 = sand.u32 %s203, 1
        %s1614 = scalar_lea.sflag [#allocation3], %s1613
        %s1615 = sand.u32 %s203, 1
        %s1616 = smul.addr %s1615, 64
        %s1617 = scalar_lea.vmem [#allocation2], %s1616
        // Predicated region
        $region53: #{tpu_custom_call.1} parent=51 // pred_check
          %p1618 = pneg %p213
        $region54: #{tpu_custom_call.1} parent=51 // pred_check_branch
          %1620 = sbr.rel (%p1618) target = $region56
        $region55: #{tpu_custom_call.1} parent=51 // pred_region
          %1622 = vsyncadd %s1614, 0
          %s1623 = smul.addr %s22, 8
          %s1624 = smul.addr %s1623, 8
          %s1625 = scalar_lea.hbm %s8, %s1624
          %s1626 = sshll.u32 %s1617, 4
          %s1627 = int_to_ptr.vmem [resolvable:$true] %s1626
          %s1628 = sshll.u32 %s1625, 4
          %s1629 = int_to_ptr.hbm [resolvable:$true] %s1628
          %1634 = dma.vmem_to_hbm [thread:$0]  %s1627, 1024, %s1629, %s1614, 256, 256, 16
        $region56: #{tpu_custom_call.1} parent=51 // pred_fallthru
          _
      $region52: #{tpu_custom_call.1} parent=5 // pred_fallthru
        _
      %p1635 = scmp.le.s32.totalorder 2, %s17
      // Predicated region
      $region57: #{tpu_custom_call.1} parent=5 // pred_check
        %p1636 = pneg %p1635
      $region58: #{tpu_custom_call.1} parent=5 // pred_check_branch
        %1638 = sbr.rel (%p1636) target = $region60
      $region59: #{tpu_custom_call.1} parent=5 // pred_region
        %s1639 = ssub.s32 %s17, 2
        // Predicated region
        $region61: #{tpu_custom_call.1} parent=59 // pred_check
          %p1640 = pneg %p219
        $region62: #{tpu_custom_call.1} parent=59 // pred_check_branch
          %1642 = sbr.rel (%p1640) target = $region64
        $region63: #{tpu_custom_call.1} parent=59 // pred_region
          %s1643 = sand.u32 %s204, 1
          %s1644 = scalar_lea.sflag [#allocation3], %s1643
          %s1645 = sand.u32 %s204, 1
          %s1646 = smul.addr %s1645, 64
          %s1647 = scalar_lea.vmem [#allocation2], %s1646
          %1649 = dma.done %s1644, 1024
        $region64: #{tpu_custom_call.1} parent=59 // pred_fallthru
          _
      $region60: #{tpu_custom_call.1} parent=5 // pred_fallthru
        _
    $region6: #{tpu_custom_call.1} parent=1 // loop_footer
      %s21 = sadd.s32 1, %s17
    $region7: #{tpu_custom_call.1} parent=1 // loop_footer_branch
      %16 = sbr.rel target = $region3
    $region8: #{tpu_custom_call.1} parent=1 // loop_exit
      _
    %1650 = vsyncpa [#allocation3], 1
    %s1651 = scalar_lea.sflag [#allocation3], 1
    %1652 = vsyncpa %s1651, 1

</llo_original>
